<compile_context>
chip_gen: v6e
topology: v6e:2x2x1
jax: 0.10.0
libtpu: 0.0.40
codegen_flags: <defaults>
</compile_context>

<pallas_src>
import functools
import numpy as np
import jax
import jax.numpy as jnp
from jax import lax
from jax.experimental import pallas as pl
from jax.experimental.pallas import tpu as pltpu


def _round_up(v, m):
    return (v + m - 1) // m * m


def _bspec(shape, index_map, buffered=None):
    """BlockSpec helper; requests deeper pipelining when the API supports it."""
    if buffered is not None and hasattr(pl, "Buffered"):
        try:
            return pl.BlockSpec(shape, index_map, pipeline_mode=pl.Buffered(buffered))
        except TypeError:
            pass
    return pl.BlockSpec(shape, index_map)


# ---------------------------------------------------------------------------
# Fused matmul kernel (1x1 convs, stem/stride-2 im2col convs, PSP operator matmuls)
# ---------------------------------------------------------------------------
def _mm_kernel(*refs, relu, has_affine, has_res):
    """acc = X @ W (bf16 x bf16 -> f32 MXU); out = [relu]((acc*scale+bias) [+ res])."""
    x_ref, w_ref = refs[0], refs[1]
    idx = 2
    s_ref = b_ref = r_ref = None
    if has_affine:
        s_ref, b_ref = refs[idx], refs[idx + 1]
        idx += 2
    if has_res:
        r_ref = refs[idx]
        idx += 1
    o_ref, acc_ref = refs[idx], refs[idx + 1]

    k = pl.program_id(2)

    @pl.when(k == 0)
    def _():
        acc_ref[...] = jnp.zeros_like(acc_ref)

    acc_ref[...] += jnp.dot(x_ref[...], w_ref[...],
                            preferred_element_type=jnp.float32)

    @pl.when(k == pl.num_programs(2) - 1)
    def _():
        y = acc_ref[...]
        if has_affine:
            y = y * s_ref[...] + b_ref[...]
        if has_res:
            y = y + r_ref[...].astype(jnp.float32)
        if relu:
            y = jnp.maximum(y, 0.0)
        o_ref[...] = y.astype(o_ref.dtype)


def _pick_tiles(M, K, N):
    """Adaptive tiles: full (unpadded) dims when small, 512/256 lane-dense tiles otherwise."""
    if M <= 512:
        TM = M
    elif M % 512 == 0:
        TM = 512
    else:
        TM = 256                       # partial tail blocks are masked by Pallas
    if N <= 512:
        TN = N
    elif N % 512 == 0:
        TN = 512
    else:
        TN = 256                       # no 128-wide fallback (half-width MXU on v6e/v7x)
    if K <= 2048:
        TK = K                         # full K block -> no jnp.pad of x / w
    else:
        TK = 0
        for cand in range(1536, 127, -128):   # largest mult-of-128 divisor of K
            if K % cand == 0:
                TK = cand
                break
        if TK == 0:
            TK = 512                   # fallback: K padded up to a multiple of 512
    # v7x has 2 TensorCores: make sure the "parallel" (i, j) grid has >= 2 blocks.
    if M >= 16 and pl.cdiv(M, TM) * pl.cdiv(N, TN) == 1:
        TM = max(8, _round_up((M + 1) // 2, 8))
    return TM, TN, TK


def fused_matmul(x, w, scale=None, bias=None, res=None, relu=False,
                 out_dtype=jnp.bfloat16):
    """Y = [relu]((X @ W) * scale + bias [+ res]); bf16 MXU operands, f32 accumulation."""
    M, K = x.shape
    N = w.shape[1]
    TM, TN, TK = _pick_tiles(M, K, N)
    Kp = _round_up(K, TK)

    x = x.astype(jnp.bfloat16)
    w = w.astype(jnp.bfloat16)
    if Kp != K:                        # never hit in this network (TK == K or divides K)
        x = jnp.pad(x, ((0, 0), (0, Kp - K)))
        w = jnp.pad(w, ((0, Kp - K), (0, 0)))
    nK = Kp // TK
    kbuf = 3 if nK > 2 else None       # deeper buffering only when K is actually streamed

    has_affine = scale is not None
    has_res = res is not None
    args = [x, w]
    in_specs = [_bspec((TM, TK), lambda i, j, k: (i, k), kbuf),
                _bspec((TK, TN), lambda i, j, k: (k, j), kbuf)]
    if has_affine:
        args += [scale.astype(jnp.float32).reshape(1, N),
                 bias.astype(jnp.float32).reshape(1, N)]
        in_specs += [pl.BlockSpec((1, TN), lambda i, j, k: (0, j)),
                     pl.BlockSpec((1, TN), lambda i, j, k: (0, j))]
    if has_res:
        args.append(res)
        in_specs.append(pl.BlockSpec((TM, TN), lambda i, j, k: (i, j)))

    out_bytes = jnp.dtype(out_dtype).itemsize
    return pl.pallas_call(
        functools.partial(_mm_kernel, relu=relu, has_affine=has_affine,
                          has_res=has_res),
        out_shape=jax.ShapeDtypeStruct((M, N), out_dtype),
        grid_spec=pltpu.PrefetchScalarGridSpec(
            num_scalar_prefetch=0,
            grid=(pl.cdiv(M, TM), pl.cdiv(N, TN), nK),
            in_specs=in_specs,
            out_specs=pl.BlockSpec((TM, TN), lambda i, j, k: (i, j)),
            scratch_shapes=[pltpu.VMEM((TM, TN), jnp.float32)],
        ),
        compiler_params=pltpu.CompilerParams(
            dimension_semantics=("parallel", "parallel", "arbitrary")),
        cost_estimate=pl.CostEstimate(
            flops=2 * M * N * K, transcendentals=0,
            bytes_accessed=M * Kp * 2 + Kp * N * 2 + M * N * out_bytes),
    )(*args)


# ---------------------------------------------------------------------------
# Direct 3x3 stride-1 conv kernel: haloed row window via manual DMA, in-kernel tap
# accumulation (no HBM im2col), folded BN/bias, optional ReLU.
# ---------------------------------------------------------------------------
def _conv3x3_kernel(xp_ref, w_ref, s_ref, b_ref, o_ref, xwin, sem,
                    *, TH, W, Cin, Hp, relu):
    n = pl.program_id(0)
    i = pl.program_id(2)
    n_h = pl.num_programs(2)
    slot = lax.rem(i, 2)

    def win_copy(step, buf_slot):
        return pltpu.make_async_copy(
            xp_ref.at[pl.ds(n * Hp + step * TH, TH + 2)],
            xwin.at[buf_slot], sem.at[buf_slot])

    @pl.when(i == 0)                     # prime the pipeline at each (n, j) boundary
    def _():
        win_copy(i, slot).start()

    win_copy(i, slot).wait()

    @pl.when(i + 1 < n_h)                # prefetch next haloed window while computing
    def _():
        win_copy(i + 1, 1 - slot).start()

    cur = xwin.at[slot]                  # (TH+2, W+2, Cin) bf16 window view
    acc = None
    for dy in range(3):
        for dx in range(3):
            tap = dy * 3 + dx
            xs = cur[dy:dy + TH, dx:dx + W, :].reshape(TH * W, Cin)
            part = jnp.dot(xs, w_ref[tap * Cin:(tap + 1) * Cin, :],
                           preferred_element_type=jnp.float32)
            acc = part if acc is None else acc + part
    y = acc * s_ref[...] + b_ref[...]
    if relu:
        y = jnp.maximum(y, 0.0)
    o_ref[...] = y.reshape(o_ref.shape).astype(o_ref.dtype)


def _pick_th(H, W, Cin, Cout_tile):
    """Largest divisor of H whose haloed window + accumulator stay within budget."""
    Wp = W + 2
    best = 1
    for th in range(1, H + 1):
        if H % th:
            continue
        win = (th + 2) * Wp * Cin * 2          # one bf16 window buffer
        acc = th * W * Cout_tile * 4           # f32 accumulator
        if 2 * win + acc <= 8 * 1024 * 1024:
            best = th
    return best


@functools.partial(jax.jit, static_argnames=("relu", "out_dtype"))
def _conv3x3_direct_jit(x, w, scale, bias, *, relu, out_dtype=jnp.bfloat16):
    N, H, W, Cin = x.shape
    Cout = w.shape[1]
    Hp, Wp = H + 2, W + 2
    xp = jnp.pad(x.astype(jnp.bfloat16), ((0, 0), (1, 1), (1, 1), (0, 0)))
    xp = xp.reshape(N * Hp, Wp, Cin)           # flat row index -> single pl.ds DMA slice
    TCout = Cout if Cout <= 256 else 256
    TH = _pick_th(H, W, Cin, TCout)
    n_h = H // TH
    n_co = pl.cdiv(Cout, TCout)

    kernel = functools.partial(_conv3x3_kernel, TH=TH, W=W, Cin=Cin, Hp=Hp, relu=relu)
    return pl.pallas_call(
        kernel,
        out_shape=jax.ShapeDtypeStruct((N, H, W, Cout), out_dtype),
        grid_spec=pltpu.PrefetchScalarGridSpec(
            num_scalar_prefetch=0,
            grid=(N, n_co, n_h),               # H innermost: window prefetch chain stays local
            in_specs=[
                pl.BlockSpec(memory_space=pl.ANY),                        # padded input (HBM)
                pl.BlockSpec((9 * Cin, TCout), lambda n, j, i: (0, j)),   # tap-major weights
                pl.BlockSpec((1, TCout), lambda n, j, i: (0, j)),         # folded BN scale
                pl.BlockSpec((1, TCout), lambda n, j, i: (0, j)),         # folded BN bias
            ],
            out_specs=pl.BlockSpec((1, TH, W, TCout), lambda n, j, i: (n, i, 0, j)),
            scratch_shapes=[
                pltpu.VMEM((2, TH + 2, Wp, Cin), jnp.bfloat16),           # double-buffered halo
                pltpu.SemaphoreType.DMA((2,)),
            ],
        ),
        compiler_params=pltpu.CompilerParams(
            dimension_semantics=("parallel", "parallel", "arbitrary"),
            vmem_limit_bytes=40 * 1024 * 1024),
        cost_estimate=pl.CostEstimate(
            flops=2 * N * H * W * 9 * Cin * Cout, transcendentals=0,
            bytes_accessed=(N * Hp * Wp * Cin * 2 + 9 * Cin * Cout * 2
                            + N * H * W * Cout * 2)),
    )(xp, w.astype(jnp.bfloat16),
      scale.astype(jnp.float32).reshape(1, Cout),
      bias.astype(jnp.float32).reshape(1, Cout))


# ---------------------------------------------------------------------------
# Fused bilinear resize kernel: Ah @ X @ Aw^T per (batch, C-tile, row-tile) block,
# C kept on lanes -> no XLA transpose round-trips.  Optional fused "+ skip" (up_and_add).
# ---------------------------------------------------------------------------
def _resize_kernel(*refs, has_add):
    ah_ref, aw_ref, x_ref = refs[0], refs[1], refs[2]
    a_ref = refs[3] if has_add else None
    o_ref = refs[-1]
    H, W, TC = x_ref.shape[1], x_ref.shape[2], x_ref.shape[3]
    tho = ah_ref.shape[0]

    x2 = x_ref[0].reshape(H, W * TC)
    t = jnp.dot(ah_ref[...], x2, preferred_element_type=jnp.float32)   # (THo, W*TC)
    t3 = t.reshape(tho, W, TC).astype(jnp.bfloat16)
    aw = aw_ref[...]
    rows = []
    for o in range(tho):               # per output row: (Wo, W) @ (W, TC) on the MXU
        rows.append(jnp.dot(aw, t3[o], preferred_element_type=jnp.float32))
    y = jnp.stack(rows, axis=0)        # (THo, Wo, TC)
    if has_add:
        y = y + a_ref[0].astype(jnp.float32)
    o_ref[0] = y.astype(o_ref.dtype)


def _interp_matrix(in_size, out_size, align_corners):
    if align_corners:
        src = (np.zeros(out_size) if out_size == 1
               else np.arange(out_size) * (in_size - 1) / (out_size - 1))
    else:
        src = (np.arange(out_size) + 0.5) * in_size / out_size - 0.5
        src = np.clip(src, 0.0, in_size - 1)
    lo = np.clip(np.floor(src).astype(np.int64), 0, in_size - 1)
    hi = np.minimum(lo + 1, in_size - 1)
    w_hi = (src - lo).astype(np.float32)
    w_lo = (1.0 - w_hi).astype(np.float32)
    A = np.zeros((out_size, in_size), np.float32)
    A[np.arange(out_size), lo] += w_lo
    A[np.arange(out_size), hi] += w_hi
    return A


@functools.partial(jax.jit,
                   static_argnames=("out_h", "out_w", "align_corners", "out_dtype"))
def bilinear_resize(x, add=None, *, out_h, out_w, align_corners,
                    out_dtype=jnp.bfloat16):
    """F.interpolate(mode='bilinear') on NHWC (+ optional fused skip-add)."""
    N, H, W, C = x.shape
    if (H, W) == (out_h, out_w):
        y = x if add is None else x + add
        return y.astype(out_dtype)
    if H == 1 and W == 1:                           # size-1 axes: pure broadcast
        y = jnp.broadcast_to(x, (N, out_h, out_w, C))
        if add is not None:
            y = y + add
        return y.astype(out_dtype)

    Ah = jnp.asarray(_interp_matrix(H, out_h, align_corners), jnp.bfloat16)
    Aw = jnp.asarray(_interp_matrix(W, out_w, align_corners), jnp.bfloat16)
    TC = C if C <= 512 else (256 if C % 256 == 0 else C)
    THo = out_h if out_h <= 16 else 16
    has_add = add is not None

    in_specs = [
        pl.BlockSpec((THo, H), lambda n, c, i: (i, 0)),
        pl.BlockSpec((out_w, W), lambda n, c, i: (0, 0)),
        pl.BlockSpec((1, H, W, TC), lambda n, c, i: (n, 0, 0, c)),
    ]
    args = [Ah, Aw, x.astype(jnp.bfloat16)]
    if has_add:
        in_specs.append(pl.BlockSpec((1, THo, out_w, TC), lambda n, c, i: (n, i, 0, c)))
        args.append(add)

    out_bytes = jnp.dtype(out_dtype).itemsize
    return pl.pallas_call(
        functools.partial(_resize_kernel, has_add=has_add),
        out_shape=jax.ShapeDtypeStruct((N, out_h, out_w, C), out_dtype),
        grid_spec=pltpu.PrefetchScalarGridSpec(
            num_scalar_prefetch=0,
            grid=(N, pl.cdiv(C, TC), pl.cdiv(out_h, THo)),
            in_specs=in_specs,
            out_specs=pl.BlockSpec((1, THo, out_w, TC), lambda n, c, i: (n, i, 0, c)),
        ),
        compiler_params=pltpu.CompilerParams(
            dimension_semantics=("parallel", "parallel", "parallel")),
        cost_estimate=pl.CostEstimate(
            flops=2 * N * C * (out_h * H * W + out_h * out_w * W),
            transcendentals=0,
            bytes_accessed=N * H * W * C * 2 + N * out_h * out_w * C * out_bytes),
    )(*args)


# ---------------------------------------------------------------------------
# MaxPool 3x3 / stride 2 / pad 1
# ---------------------------------------------------------------------------
@jax.jit
def maxpool_3x3_s2(x):
    # TODO(synk): left as an XLA strided-slice max fusion (single HBM pass) per perf review;
    # a Pallas version would need haloed windows with stride-2 sublane loads.
    N, H, W, C = x.shape
    Ho, Wo = (H - 1) // 2 + 1, (W - 1) // 2 + 1
    xp = jnp.pad(x, ((0, 0), (1, 1), (1, 1), (0, 0)), constant_values=-1e30)
    m = None
    for i in range(3):
        for j in range(3):
            t = xp[:, i:i + 2 * Ho:2, j:j + 2 * Wo:2, :]
            m = t if m is None else jnp.maximum(m, t)
    return m


# ---------------------------------------------------------------------------
# Conv dispatch glue (im2col only for the stem, stride-2 3x3 convs and the 4096-ch PSP conv)
# ---------------------------------------------------------------------------
def _im2col(x, k, stride, pad):
    N, H, W, C = x.shape
    Ho = (H + 2 * pad - k) // stride + 1
    Wo = (W + 2 * pad - k) // stride + 1
    xp = x if pad == 0 else jnp.pad(x, ((0, 0), (pad, pad), (pad, pad), (0, 0)))
    taps = [xp[:, i:i + stride * Ho:stride, j:j + stride * Wo:stride, :]
            for i in range(k) for j in range(k)]
    patches = jnp.stack(taps, axis=3)            # (N, Ho, Wo, k*k, C)
    return patches, Ho, Wo


@functools.partial(jax.jit,
                   static_argnames=("k", "stride", "pad", "relu", "out_dtype"))
def _conv_affine_mm_jit(x, w, scale, bias, residual, *, k, stride, pad, relu,
                        out_dtype=jnp.bfloat16):
    N, H, W, C = x.shape
    if k == 1:
        if stride > 1:
            x = x[:, ::stride, ::stride, :]
        N, Ho, Wo, C = x.shape
        xm = x.reshape(N * Ho * Wo, C)
    else:
        # TODO(synk): the 7x7 stem, the 3 stride-2 3x3 convs and the 4096-channel PSP
        # bottleneck still materialize an im2col patch matrix; all stride-1 3x3 convs use
        # the direct haloed-window kernel instead.
        patches, Ho, Wo = _im2col(x, k, stride, pad)
        xm = patches.reshape(N * Ho * Wo, k * k * C)
    rm = None if residual is None else residual.reshape(N * Ho * Wo, -1)
    y = fused_matmul(xm, w, scale, bias, res=rm, relu=relu, out_dtype=out_dtype)
    return y.reshape(N, Ho, Wo, -1)


def conv_affine(x, p, relu, residual=None, out_dtype=jnp.bfloat16):
    """Conv2d (+ folded BN / bias) (+ residual add) (+ ReLU)."""
    k, stride, pad = p["k"], p["stride"], p["pad"]
    if (k == 3 and stride == 1 and pad == 1 and residual is None
            and x.shape[-1] <= 1024):
        return _conv3x3_direct_jit(x, p["w"], p["scale"], p["bias"],
                                   relu=relu, out_dtype=out_dtype)
    return _conv_affine_mm_jit(x, p["w"], p["scale"], p["bias"], residual,
                               k=k, stride=stride, pad=pad, relu=relu,
                               out_dtype=out_dtype)


def _pool_matrix(in_size, out_size):
    A = np.zeros((out_size, in_size), np.float32)
    for o in range(out_size):
        s = (o * in_size) // out_size
        e = -((-(o + 1) * in_size) // out_size)     # ceil
        A[o, s:e] = 1.0 / (e - s)
    return A


# ---------------------------------------------------------------------------
# Parameters (deterministic synthetic init; weights pre-cast to bf16 once)
# ---------------------------------------------------------------------------
def build_params(seed=0):
    rng = np.random.default_rng(seed)

    def conv_params(cin, cout, k, stride=1, pad=0, bn=True, bias=False):
        w = 0.02 * rng.standard_normal((k * k * cin, cout), dtype=np.float32)
        if bn:   # eval-mode BN folded: scale = gamma/sqrt(var+eps), bias = beta - mean*scale
            gamma = 1.0 + 0.05 * rng.standard_normal(cout, dtype=np.float32)
            beta = 0.05 * rng.standard_normal(cout, dtype=np.float32)
            mean = 0.05 * rng.standard_normal(cout, dtype=np.float32)
            var = 1.0 + 0.05 * np.abs(rng.standard_normal(cout, dtype=np.float32))
            scale = gamma / np.sqrt(var + 1e-5)
            bvec = beta - mean * scale
        elif bias:
            scale = np.ones(cout, np.float32)
            bvec = 0.02 * rng.standard_normal(cout, dtype=np.float32)
        else:
            scale = np.ones(cout, np.float32)
            bvec = np.zeros(cout, np.float32)
        return dict(w=jnp.asarray(w, jnp.bfloat16),
                    scale=jnp.asarray(scale, jnp.float32),
                    bias=jnp.asarray(bvec, jnp.float32),
                    k=k, stride=stride, pad=pad)

    def bottleneck_params(cin, planes, stride, downsample):
        p = dict(conv1=conv_params(cin, planes, 1),
                 conv2=conv_params(planes, planes, 3, stride=stride, pad=1),
                 conv3=conv_params(planes, planes * 4, 1))
        if downsample:
            p["downsample"] = conv_params(cin, planes * 4, 1, stride=stride)
        return p

    def layer_params(cin, planes, blocks, stride):
        layer = [bottleneck_params(cin, planes, stride, True)]
        layer += [bottleneck_params(planes * 4, planes, 1, False) for _ in range(blocks - 1)]
        return layer

    num_classes, fpn_out = 11, 256
    head = conv_params(fpn_out, num_classes, 3, pad=1, bn=False, bias=True)
    padc = 128 - num_classes                      # lane-dense head output, sliced back to 11
    head["w"] = jnp.pad(head["w"], ((0, 0), (0, padc)))
    head["scale"] = jnp.pad(head["scale"], (0, padc), constant_values=1.0)
    head["bias"] = jnp.pad(head["bias"], (0, padc))

    return dict(
        num_classes=num_classes,
        stem=conv_params(3, 64, 7, stride=2, pad=3),
        layer1=layer_params(64, 64, 3, 1),          # ResNet-101: [3, 4, 23, 3]
        layer2=layer_params(256, 128, 4, 2),
        layer3=layer_params(512, 256, 23, 2),
        layer4=layer_params(1024, 512, 3, 2),
        psp=dict(
            stages=[conv_params(2048, 512, 1) for _ in (1, 2, 4, 6)],
            bottleneck=conv_params(2048 + 4 * 512, 2048, 3, pad=1),
        ),
        fpn_conv1x1=[conv_params(512, fpn_out, 1, bn=False, bias=True),
                     conv_params(1024, fpn_out, 1, bn=False, bias=True),
                     conv_params(2048, fpn_out, 1, bn=False, bias=True)],
        smooth=conv_params(fpn_out, fpn_out, 3, pad=1, bn=False, bias=True),  # shared x3
        fusion=conv_params(4 * fpn_out, fpn_out, 3, pad=1),
        head=head,
    )


# ---------------------------------------------------------------------------
# Forward pass
# ---------------------------------------------------------------------------
def _bottleneck(x, bp):
    identity = x
    out = conv_affine(x, bp["conv1"], relu=True)
    out = conv_affine(out, bp["conv2"], relu=True)
    if "downsample" in bp:
        identity = conv_affine(x, bp["downsample"], relu=False)
    # conv3 + BN + residual add + ReLU fused into one Pallas call
    return conv_affine(out, bp["conv3"], relu=True, residual=identity)


def _psp_module(f, psp, bins=(1, 2, 4, 6)):
    N, h, w, C = f.shape                                   # C = 2048
    # all 4 adaptive average pools as ONE operator matmul
    A_all = jnp.asarray(
        np.concatenate([np.kron(_pool_matrix(h, b), _pool_matrix(w, b)) for b in bins],
                       axis=0), jnp.float32)               # (sum b^2, h*w)
    x2 = jnp.transpose(f, (1, 2, 0, 3)).reshape(h * w, N * C)
    pooled = fused_matmul(A_all, x2)                       # (sum b^2, N*C) bf16

    # all 4 stage 1x1 convs (+BN+ReLU) as ONE matmul, weights stacked along Cout
    offs = np.cumsum([0] + [b * b for b in bins])
    xs = []
    for s, b in enumerate(bins):
        blk = pooled[offs[s]:offs[s + 1]].reshape(b * b, N, C)
        xs.append(jnp.transpose(blk, (1, 0, 2)).reshape(N * b * b, C))
    x_all = jnp.concatenate(xs, axis=0)                    # (N*sum b^2, C)
    w_all = jnp.concatenate([sp["w"] for sp in psp["stages"]], axis=1)
    s_all = jnp.concatenate([sp["scale"] for sp in psp["stages"]])
    b_all = jnp.concatenate([sp["bias"] for sp in psp["stages"]])
    y_all = fused_matmul(x_all, w_all, s_all, b_all, relu=True)

    Cs = psp["stages"][0]["w"].shape[1]                    # 512
    pyramids = [f]
    for s, b in enumerate(bins):
        ys = y_all[N * offs[s]:N * offs[s + 1], s * Cs:(s + 1) * Cs].reshape(N, b, b, Cs)
        pyramids.append(bilinear_resize(ys, out_h=h, out_w=w, align_corners=True))
    cat = jnp.concatenate(pyramids, axis=-1)
    return conv_affine(cat, psp["bottleneck"], relu=True)  # Dropout2d -> identity (eval)


def resnet101_upernet_forward(x_nchw, params):
    x = jnp.transpose(x_nchw, (0, 2, 3, 1)).astype(jnp.bfloat16)   # NCHW -> NHWC, bf16
    in_h, in_w = x.shape[1], x.shape[2]

    # --- ResNet-101 backbone ---
    x = conv_affine(x, params["stem"], relu=True)
    x = maxpool_3x3_s2(x)
    feats = []
    for name in ("layer1", "layer2", "layer3", "layer4"):
        for bp in params[name]:
            x = _bottleneck(x, bp)
        feats.append(x)

    # --- PSP module on the deepest features ---
    feats[-1] = _psp_module(feats[-1], params["psp"])

    # --- FPN fuse ---
    for i in range(1, 4):
        feats[i] = conv_affine(feats[i], params["fpn_conv1x1"][i - 1], relu=False)
    P = []
    for i in (3, 2, 1):   # up_and_add fused into the resize kernel (align_corners=True)
        P.append(bilinear_resize(feats[i], feats[i - 1],
                                 out_h=feats[i - 1].shape[1],
                                 out_w=feats[i - 1].shape[2],
                                 align_corners=True))
    P = [conv_affine(p, params["smooth"], relu=False) for p in P]   # shared smooth conv
    P = list(reversed(P))
    P.append(feats[3])
    Ht, Wt = P[0].shape[1], P[0].shape[2]
    P = [P[0]] + [bilinear_resize(p, out_h=Ht, out_w=Wt, align_corners=True)
                  for p in P[1:]]
    fused = conv_affine(jnp.concatenate(P, axis=-1), params["fusion"], relu=True)

    # --- classifier head (lane-padded to 128, sliced to 11) + final upsample ---
    logits = conv_affine(fused, params["head"], relu=False)[..., :params["num_classes"]]
    out = bilinear_resize(logits, out_h=in_h, out_w=in_w, align_corners=False,
                          out_dtype=jnp.float32)
    return {"out": jnp.transpose(out, (0, 3, 1, 2))}   # back to NCHW, f32


# ---------------------------------------------------------------------------
if __name__ == "__main__":
    params = build_params(seed=0)
    x = jax.random.normal(jax.random.PRNGKey(0), (2, 3, 64, 64), dtype=jnp.float32)
    out = resnet101_upernet_forward(x, params)
    y = jax.block_until_ready(out["out"])
    assert y.shape == (2, 11, 64, 64), y.shape
    assert bool(jnp.all(jnp.isfinite(y)))
    print("KERNEL_OK")
</pallas_src>

<mosaic_0001>
module attributes {stable_mosaic.version = 11 : i64} {
  func.func @_mm_kernel(%arg0: i32, %arg1: i32, %arg2: i32, %arg3: memref<512x147xbf16, #tpu.memory_space<vmem>>, %arg4: memref<147x64xbf16, #tpu.memory_space<vmem>>, %arg5: memref<1x64xf32, #tpu.memory_space<vmem>>, %arg6: memref<1x64xf32, #tpu.memory_space<vmem>>, %arg7: memref<512x64xbf16, #tpu.memory_space<vmem>>, %arg8: memref<512x64xf32, #tpu.memory_space<vmem>>) attributes {dimension_semantics = [#tpu.dimension_semantics<parallel>, #tpu.dimension_semantics<parallel>, #tpu.dimension_semantics<arbitrary>], iteration_bounds = array<i64: 4, 1, 1>, scalar_prefetch = 0 : i64, scratch_operands = 1 : i64, tpu.core_type = #tpu.core_type<tc>, window_params = [{transform_indices = @transform_0, window_bounds = array<i64: 512, 147>}, {transform_indices = @transform_1, window_bounds = array<i64: 147, 64>}, {transform_indices = @transform_2, window_bounds = array<i64: 1, 64>}, {transform_indices = @transform_3, window_bounds = array<i64: 1, 64>}, {transform_indices = @transform_4, window_bounds = array<i64: 512, 64>}]} {
    %c0_i32 = arith.constant 0 : i32
    %0 = arith.cmpi eq, %arg2, %c0_i32 : i32
    %1 = arith.extui %0 : i1 to i32
    %c0_i32_0 = arith.constant 0 : i32
    %2 = arith.cmpi ne, %1, %c0_i32_0 : i32
    scf.if %2 {
      %cst_10 = arith.constant 0.000000e+00 : f32
      %12 = vector.broadcast %cst_10 : f32 to vector<512x64xf32>
      %c0_11 = arith.constant 0 : index
      %c0_12 = arith.constant 0 : index
      %13 = vector.load %arg8[%c0_11, %c0_12] : memref<512x64xf32, #tpu.memory_space<vmem>>, vector<512x64xf32>
      tpu.vector_store %arg8[%c0_11, %c0_12], %12 {strides = array<i32>} : memref<512x64xf32, #tpu.memory_space<vmem>>, vector<512x64xf32>,
    } else {
    }
    %c0 = arith.constant 0 : index
    %c0_1 = arith.constant 0 : index
    %3 = vector.load %arg8[%c0, %c0_1] : memref<512x64xf32, #tpu.memory_space<vmem>>, vector<512x64xf32>
    %c0_2 = arith.constant 0 : index
    %c0_3 = arith.constant 0 : index
    %4 = vector.load %arg3[%c0_2, %c0_3] : memref<512x147xbf16, #tpu.memory_space<vmem>>, vector<512x147xbf16>
    %c0_4 = arith.constant 0 : index
    %c0_5 = arith.constant 0 : index
    %5 = vector.load %arg4[%c0_4, %c0_5] : memref<147x64xbf16, #tpu.memory_space<vmem>>, vector<147x64xbf16>
    %cst = arith.constant dense<0.000000e+00> : vector<512x64xf32>
    %6 = tpu.matmul %4, %5, %cst {dimension_numbers = #tpu.dot_dimension_numbers<[1], [0], [0], [1], [0, 0, 1, 1], [], []>} : vector<512x147xbf16>, vector<147x64xbf16>, vector<512x64xf32> -> vector<512x64xf32>
    %7 = arith.addf %3, %6 : vector<512x64xf32>
    %c0_6 = arith.constant 0 : index
    %c0_7 = arith.constant 0 : index
    %8 = vector.load %arg8[%c0_6, %c0_7] : memref<512x64xf32, #tpu.memory_space<vmem>>, vector<512x64xf32>
    tpu.vector_store %arg8[%c0_6, %c0_7], %7 {strides = array<i32>} : memref<512x64xf32, #tpu.memory_space<vmem>>, vector<512x64xf32>,
    %c0_i32_8 = arith.constant 0 : i32
    %9 = arith.cmpi eq, %arg2, %c0_i32_8 : i32
    %10 = arith.extui %9 : i1 to i32
    %c0_i32_9 = arith.constant 0 : i32
    %11 = arith.cmpi ne, %10, %c0_i32_9 : i32
    scf.if %11 {
      %c0_10 = arith.constant 0 : index
      %c0_11 = arith.constant 0 : index
      %12 = vector.load %arg8[%c0_10, %c0_11] : memref<512x64xf32, #tpu.memory_space<vmem>>, vector<512x64xf32>
      %c0_12 = arith.constant 0 : index
      %c0_13 = arith.constant 0 : index
      %13 = vector.load %arg5[%c0_12, %c0_13] : memref<1x64xf32, #tpu.memory_space<vmem>>, vector<1x64xf32>
      %14 = vector.broadcast %13 : vector<1x64xf32> to vector<512x64xf32>
      %15 = arith.mulf %12, %14 : vector<512x64xf32>
      %c0_14 = arith.constant 0 : index
      %c0_15 = arith.constant 0 : index
      %16 = vector.load %arg6[%c0_14, %c0_15] : memref<1x64xf32, #tpu.memory_space<vmem>>, vector<1x64xf32>
      %17 = vector.broadcast %16 : vector<1x64xf32> to vector<512x64xf32>
      %18 = arith.addf %15, %17 : vector<512x64xf32>
      %cst_16 = arith.constant 0.000000e+00 : f32
      %19 = vector.broadcast %cst_16 : f32 to vector<512x64xf32>
      %20 = arith.maximumf %18, %19 : vector<512x64xf32>
      %21 = arith.truncf %20 : vector<512x64xf32> to vector<512x64xbf16>
      %c0_17 = arith.constant 0 : index
      %c0_18 = arith.constant 0 : index
      %22 = vector.load %arg7[%c0_17, %c0_18] : memref<512x64xbf16, #tpu.memory_space<vmem>>, vector<512x64xbf16>
      tpu.vector_store %arg7[%c0_17, %c0_18], %21 {strides = array<i32>} : memref<512x64xbf16, #tpu.memory_space<vmem>>, vector<512x64xbf16>,
    } else {
    }
    return
  }
  func.func @transform_0(%arg0: i32, %arg1: i32, %arg2: i32) -> (i32, i32) {
    %c0_i32 = arith.constant 0 : i32
    return %arg0, %arg2 : i32, i32
  }
  func.func @transform_1(%arg0: i32, %arg1: i32, %arg2: i32) -> (i32, i32) {
    %c0_i32 = arith.constant 0 : i32
    return %arg2, %arg1 : i32, i32
  }
  func.func @transform_2(%arg0: i32, %arg1: i32, %arg2: i32) -> (i32, i32) {
    %c0_i32 = arith.constant 0 : i32
    %c0_i32_0 = arith.constant 0 : i32
    return %c0_i32, %arg1 : i32, i32
  }
  func.func @transform_3(%arg0: i32, %arg1: i32, %arg2: i32) -> (i32, i32) {
    %c0_i32 = arith.constant 0 : i32
    %c0_i32_0 = arith.constant 0 : i32
    return %c0_i32, %arg1 : i32, i32
  }
  func.func @transform_4(%arg0: i32, %arg1: i32, %arg2: i32) -> (i32, i32) {
    %c0_i32 = arith.constant 0 : i32
    return %arg0, %arg1 : i32, i32
  }
}

</mosaic_0001>

<llo_original>
// kernel: _conv_affine_mm_jit.1
$region0: #{_conv_affine_mm_jit.1}
  #allocation0 [shape = 'u32[]', space=smem, size = 0x4, offset = 0x4, fixed_abs, tag = 'smem constant byte address 0x4 - core index']
  #allocation1 [shape = 'u32[144,128]{1,0:T(1,128)}', space=vmem, size = 0x12000, scoped, tag = 'internal scratch']
  #allocation2 [shape = 'f32[512,64]{1,0:T(8,128)}', space=vmem, size = 0x40000, scoped, tag = 'scratch operand']
  %s0 = inlined_call_operand.vmem [shape: bf16[2048,147], index: 0, kind: input, shape index: {}]
  %s1 = inlined_call_operand.vmem [shape: bf16[147,64], index: 1, kind: input, shape index: {}]
  %s2 = inlined_call_operand.vmem [shape: f32[1,64], index: 2, kind: input, shape index: {}]
  %s3 = inlined_call_operand.vmem [shape: f32[1,64], index: 3, kind: input, shape index: {}]
  %s4 = inlined_call_operand.hbm [shape: bf16[2048,64], index: 4, kind: output, shape index: {}]
  %s5 = sld [smem:[#allocation0]]
  $region57: #{_conv_affine_mm_jit.1} parent=0
    _
  %s7 = ssub.s32 1, %s5
  %s8 = scalar_select 0, %s7, %s5
  $region1: #{_conv_affine_mm_jit.1} parent=0
    #allocation3 [shape = 'u8[262144]{0}', space=vmem, size = 0x40000, scoped, tag = 'output window, operand 0']
    #allocation4 [shape = 's32[2]{0}', space=sflag, size = 0x8, scoped, tag = 'scoped memory for _conv_affine_mm_jit.1']
    %9 = vsyncpa [#allocation4], 0
    %s10 = scalar_lea.sflag [#allocation4], 1
    %11 = vsyncpa %s10, 0
    loop: start=0, step=1, limit=6
    $region2: #{_conv_affine_mm_jit.1} parent=1 // loop_pre_header
      _
    $region3: #{_conv_affine_mm_jit.1} parent=1 // loop_header
      %s13 = sphi 0, %s17
      %p14 = scmp.ge.s32.totalorder %s13, 6
      %s20 = sphi 0, %s39
      %s21 = sphi 0, %s35
      %s22 = sphi 0, %s31
      %s23 = sphi 0, %s20
      %s24 = sphi 0, %s21
      %s25 = sphi 0, %s22
      %s26 = sphi 0, %s23
      %s27 = sphi 0, %s24
      %s28 = sphi 0, %s25
      %s44 = sphi 0, %s46
      %s47 = sphi 0, %s44
      %s48 = sphi 0, %s47
      %s64 = sphi 0, %s48
      %s72 = sphi 0, %s74
      %s75 = sphi 0, %s72
      %s76 = sphi 0, %s75
      %s92 = sphi 0, %s76
      %s98 = sphi 0, %s100
      %s101 = sphi 0, %s98
      %s102 = sphi 0, %s101
      %s118 = sphi 0, %s102
      %s124 = sphi 0, %s126
      %s127 = sphi 0, %s124
      %s128 = sphi 0, %s127
      %s144 = sphi 0, %s128
      %s152 = sphi 0, %s154
      %s155 = sphi 0, %s152
      %s156 = sphi 0, %s155
      %s172 = sphi 0, %s156
    $region4: #{_conv_affine_mm_jit.1} parent=1 // loop_header_branch
      %16 = sbr.rel (%p14) target = $region8
    $region5: #{_conv_affine_mm_jit.1} parent=1 // loop_body
      %s18 = ssub.s32 %s13, 1
      %s19 = ssub.s32 %s13, 2
      %s29 = sadd.s32 1, %s22
      %p30 = scmp.ge.s32.totalorder %s29, 1
      %s31 = scalar_select %p30, 0, %s29
      %s32 = sadd.s32 1, %s21
      %s33 = scalar_select %p30, %s32, %s21
      %p34 = scmp.ge.s32.totalorder %s33, 1
      %s35 = scalar_select %p34, 0, %s33
      %s36 = sadd.s32 1, %s20
      %s37 = scalar_select %p34, %s36, %s20
      %p38 = scmp.ge.s32.totalorder %s37, 4
      %s39 = scalar_select %p38, 0, %s37
      %s40 = ssub.s32 %s20, %s39
      %s41 = ssub.s32 %s22, %s31
      %s42 = sor.u32 %s40, %s41
      %p43 = scmp.eq.s32.totalorder %s42, 0
      %s45 = sadd.s32 %s44, 1
      %s46 = scalar_select %p43, %s44, %s45
      %p49 = pneg %p43
      %p50 = scmp.eq.s32.totalorder %s13, 3
      %p51 = por %p49, %p50
      %p52 = scmp.ne.s32.totalorder %s44, %s47
      %p53 = scmp.eq.s32.totalorder %s13, 0
      %p54 = por %p52, %p53
      %p55 = scmp.ne.s32.totalorder %s44, %s47
      %p56 = scmp.eq.s32.totalorder %s18, 3
      %p57 = por %p55, %p56
      %p58 = scmp.ne.s32.totalorder %s47, %s48
      %p59 = scmp.eq.s32.totalorder %s18, 0
      %p60 = por %p58, %p59
      %p61 = scmp.ne.s32.totalorder %s47, %s48
      %p62 = scmp.eq.s32.totalorder %s19, 3
      %p63 = por %p61, %p62
      %p65 = scmp.ne.s32.totalorder %s48, %s64
      %p66 = scmp.eq.s32.totalorder %s19, 0
      %p67 = por %p65, %p66
      %s68 = ssub.s32 %s22, %s31
      %s69 = ssub.s32 %s21, %s35
      %s70 = sor.u32 %s68, %s69
      %p71 = scmp.eq.s32.totalorder %s70, 0
      %s73 = sadd.s32 %s72, 1
      %s74 = scalar_select %p71, %s72, %s73
      %p77 = pneg %p71
      %p78 = scmp.eq.s32.totalorder %s13, 3
      %p79 = por %p77, %p78
      %p80 = scmp.ne.s32.totalorder %s72, %s75
      %p81 = scmp.eq.s32.totalorder %s13, 0
      %p82 = por %p80, %p81
      %p83 = scmp.ne.s32.totalorder %s72, %s75
      %p84 = scmp.eq.s32.totalorder %s18, 3
      %p85 = por %p83, %p84
      %p86 = scmp.ne.s32.totalorder %s75, %s76
      %p87 = scmp.eq.s32.totalorder %s18, 0
      %p88 = por %p86, %p87
      %p89 = scmp.ne.s32.totalorder %s75, %s76
      %p90 = scmp.eq.s32.totalorder %s19, 3
      %p91 = por %p89, %p90
      %p93 = scmp.ne.s32.totalorder %s76, %s92
      %p94 = scmp.eq.s32.totalorder %s19, 0
      %p95 = por %p93, %p94
      %s96 = ssub.s32 %s21, %s35
      %p97 = scmp.eq.s32.totalorder %s96, 0
      %s99 = sadd.s32 %s98, 1
      %s100 = scalar_select %p97, %s98, %s99
      %p103 = pneg %p97
      %p104 = scmp.eq.s32.totalorder %s13, 3
      %p105 = por %p103, %p104
      %p106 = scmp.ne.s32.totalorder %s98, %s101
      %p107 = scmp.eq.s32.totalorder %s13, 0
      %p108 = por %p106, %p107
      %p109 = scmp.ne.s32.totalorder %s98, %s101
      %p110 = scmp.eq.s32.totalorder %s18, 3
      %p111 = por %p109, %p110
      %p112 = scmp.ne.s32.totalorder %s101, %s102
      %p113 = scmp.eq.s32.totalorder %s18, 0
      %p114 = por %p112, %p113
      %p115 = scmp.ne.s32.totalorder %s101, %s102
      %p116 = scmp.eq.s32.totalorder %s19, 3
      %p117 = por %p115, %p116
      %p119 = scmp.ne.s32.totalorder %s102, %s118
      %p120 = scmp.eq.s32.totalorder %s19, 0
      %p121 = por %p119, %p120
      %s122 = ssub.s32 %s21, %s35
      %p123 = scmp.eq.s32.totalorder %s122, 0
      %s125 = sadd.s32 %s124, 1
      %s126 = scalar_select %p123, %s124, %s125
      %p129 = pneg %p123
      %p130 = scmp.eq.s32.totalorder %s13, 3
      %p131 = por %p129, %p130
      %p132 = scmp.ne.s32.totalorder %s124, %s127
      %p133 = scmp.eq.s32.totalorder %s13, 0
      %p134 = por %p132, %p133
      %p135 = scmp.ne.s32.totalorder %s124, %s127
      %p136 = scmp.eq.s32.totalorder %s18, 3
      %p137 = por %p135, %p136
      %p138 = scmp.ne.s32.totalorder %s127, %s128
      %p139 = scmp.eq.s32.totalorder %s18, 0
      %p140 = por %p138, %p139
      %p141 = scmp.ne.s32.totalorder %s127, %s128
      %p142 = scmp.eq.s32.totalorder %s19, 3
      %p143 = por %p141, %p142
      %p145 = scmp.ne.s32.totalorder %s128, %s144
      %p146 = scmp.eq.s32.totalorder %s19, 0
      %p147 = por %p145, %p146
      %s148 = ssub.s32 %s20, %s39
      %s149 = ssub.s32 %s21, %s35
      %s150 = sor.u32 %s148, %s149
      %p151 = scmp.eq.s32.totalorder %s150, 0
      %s153 = sadd.s32 %s152, 1
      %s154 = scalar_select %p151, %s152, %s153
      %p157 = pneg %p151
      %p158 = scmp.eq.s32.totalorder %s13, 3
      %p159 = por %p157, %p158
      %p160 = scmp.ne.s32.totalorder %s152, %s155
      %p161 = scmp.eq.s32.totalorder %s13, 0
      %p162 = por %p160, %p161
      %p163 = scmp.ne.s32.totalorder %s152, %s155
      %p164 = scmp.eq.s32.totalorder %s18, 3
      %p165 = por %p163, %p164
      %p166 = scmp.ne.s32.totalorder %s155, %s156
      %p167 = scmp.eq.s32.totalorder %s18, 0
      %p168 = por %p166, %p167
      %p169 = scmp.ne.s32.totalorder %s155, %s156
      %p170 = scmp.eq.s32.totalorder %s19, 3
      %p171 = por %p169, %p170
      %p173 = scmp.ne.s32.totalorder %s156, %s172
      %p174 = scmp.eq.s32.totalorder %s19, 0
      %p175 = por %p173, %p174
      %p176 = scmp.le.s32.totalorder 1, %s13
      %p177 = scmp.lt.s32.totalorder %s13, 5
      %p178 = pnand %p176, %p177
      %p179 = pneg %p178
      // Predicated region
      $region9: #{_conv_affine_mm_jit.1} parent=5 // pred_check
        _
      $region10: #{_conv_affine_mm_jit.1} parent=5 // pred_check_branch
        %181 = sbr.rel (%p178) target = $region12
      $region11: #{_conv_affine_mm_jit.1} parent=5 // pred_region
        %s182 = ssub.s32 %s13, 1
        // Predicated region
        $region13: #{_conv_affine_mm_jit.1} parent=11 // pred_check
          %p183 = pneg %p88
        $region14: #{_conv_affine_mm_jit.1} parent=11 // pred_check_branch
          %185 = sbr.rel (%p183) target = $region16
        $region15: #{_conv_affine_mm_jit.1} parent=11 // pred_region
          %s186 = smul.u32 19, %s25
          %p187 = scmp.lt.s32.totalorder %s186, 18
          %s188 = scalar_select %p187, %s186, 18
          %p189 = scmp.lt.s32.totalorder %s24, 0
          %s190 = scalar_select %p189, %s24, 0
          %s191 = sadd.s32 %s190, %s188
          %s192 = smul.addr %s191, 4
          %s193 = scalar_lea.vmem %s1, %s192
          %s194 = smul.u32 19, %s25
        $region16: #{_conv_affine_mm_jit.1} parent=11 // pred_fallthru
          _
        // Predicated region
        $region17: #{_conv_affine_mm_jit.1} parent=11 // pred_check
          %p195 = pneg %p114
        $region18: #{_conv_affine_mm_jit.1} parent=11 // pred_check_branch
          %197 = sbr.rel (%p195) target = $region20
        $region19: #{_conv_affine_mm_jit.1} parent=11 // pred_region
          %p198 = scmp.lt.s32.totalorder %s24, 0
          %s199 = scalar_select %p198, %s24, 0
          %s200 = scalar_lea.vmem %s2, %s199
        $region20: #{_conv_affine_mm_jit.1} parent=11 // pred_fallthru
          _
        // Predicated region
        $region21: #{_conv_affine_mm_jit.1} parent=11 // pred_check
          %p201 = pneg %p140
        $region22: #{_conv_affine_mm_jit.1} parent=11 // pred_check_branch
          %203 = sbr.rel (%p201) target = $region24
        $region23: #{_conv_affine_mm_jit.1} parent=11 // pred_region
          %p204 = scmp.lt.s32.totalorder %s24, 0
          %s205 = scalar_select %p204, %s24, 0
          %s206 = scalar_lea.vmem %s3, %s205
        $region24: #{_conv_affine_mm_jit.1} parent=11 // pred_fallthru
          _
      $region12: #{_conv_affine_mm_jit.1} parent=5 // pred_fallthru
        _
      %p207 = scmp.lt.s32.totalorder %s13, 4
      // Predicated region
      $region25: #{_conv_affine_mm_jit.1} parent=5 // pred_check
        %p208 = pneg %p207
      $region26: #{_conv_affine_mm_jit.1} parent=5 // pred_check_branch
        %210 = sbr.rel (%p208) target = $region28
      $region27: #{_conv_affine_mm_jit.1} parent=5 // pred_region
        // Predicated region
        $region29: #{_conv_affine_mm_jit.1} parent=27 // pred_check
          %p211 = pneg %p54
        $region30: #{_conv_affine_mm_jit.1} parent=27 // pred_check_branch
          %213 = sbr.rel (%p211) target = $region32
        $region31: #{_conv_affine_mm_jit.1} parent=27 // pred_region
          %s214 = smul.u32 64, %s20
          %s215 = smul.u32 2, %s22
          %p216 = scmp.lt.s32.totalorder %s214, 255
          %s217 = scalar_select %p216, %s214, 255
          %p218 = scmp.lt.s32.totalorder %s215, 1
          %s219 = scalar_select %p218, %s215, 1
          %s220 = smul.addr %s217, 2
          %s221 = sadd.s32 %s219, %s220
          %s222 = smul.addr %s221, 4
          %s223 = scalar_lea.vmem %s0, %s222
          %s224 = smul.u32 64, %s20
          %s225 = smul.u32 2, %s22
        $region32: #{_conv_affine_mm_jit.1} parent=27 // pred_fallthru
          _
      $region28: #{_conv_affine_mm_jit.1} parent=5 // pred_fallthru
        _
      %p226 = scmp.le.s32.totalorder 1, %s13
      %p227 = scmp.lt.s32.totalorder %s13, 5
      %p228 = pnand %p226, %p227
      %p229 = pneg %p228
      // Predicated region
      $region33: #{_conv_affine_mm_jit.1} parent=5 // pred_check
        _
      $region34: #{_conv_affine_mm_jit.1} parent=5 // pred_check_branch
        %231 = sbr.rel (%p228) target = $region36
      $region35: #{_conv_affine_mm_jit.1} parent=5 // pred_region
        %s232 = ssub.s32 %s13, 1
        %s233 = smul.u32 64, %s23
        %s234 = smul.u32 2, %s25
        %p235 = scmp.lt.s32.totalorder %s233, 255
        %s236 = scalar_select %p235, %s233, 255
        %p237 = scmp.lt.s32.totalorder %s234, 1
        %s238 = scalar_select %p237, %s234, 1
        %s239 = smul.addr %s236, 2
        %s240 = sadd.s32 %s238, %s239
        %s241 = smul.addr %s240, 4
        %s242 = scalar_lea.vmem %s0, %s241
        %p243 = pneg %p60
        %p244 = pneg %p57
        %s245 = smul.u32 19, %s25
        %p246 = scmp.lt.s32.totalorder %s245, 18
        %s247 = scalar_select %p246, %s245, 18
        %p248 = scmp.lt.s32.totalorder %s24, 0
        %s249 = scalar_select %p248, %s24, 0
        %s250 = sadd.s32 %s249, %s247
        %s251 = smul.addr %s250, 4
        %s252 = scalar_lea.vmem %s1, %s251
        %p253 = pneg %p88
        %p254 = pneg %p85
        %p255 = scmp.lt.s32.totalorder %s24, 0
        %s256 = scalar_select %p255, %s24, 0
        %s257 = scalar_lea.vmem %s2, %s256
        %p258 = pneg %p114
        %p259 = pneg %p111
        %p260 = scmp.lt.s32.totalorder %s24, 0
        %s261 = scalar_select %p260, %s24, 0
        %s262 = scalar_lea.vmem %s3, %s261
        %p263 = pneg %p140
        %p264 = pneg %p137
        %p265 = pneg %p168
        %p266 = pneg %p165
        %s267 = sand.u32 %s155, 1
        %s268 = scalar_lea.sflag [#allocation4], %s267
        %s269 = sand.u32 %s155, 1
        %s270 = smul.addr %s269, 256
        %s271 = scalar_lea.vmem [#allocation3], %s270
        %s272 = smul.u32 64, %s23
        %s273 = smul.u32 2, %s25
        %p274 = scmp.lt.s32.totalorder %s272, 255
        %s275 = scalar_select %p274, %s272, 255
        %p276 = scmp.lt.s32.totalorder %s273, 1
        %s277 = scalar_select %p276, %s273, 1
        %s278 = smul.addr %s275, 2
        %s279 = sadd.s32 %s277, %s278
        %s280 = smul.addr %s279, 4
        %s281 = scalar_lea.vmem %s0, %s280
        %s282 = smul.u32 64, %s23
        %s283 = smul.u32 2, %s25
        %s284 = smul.u32 19, %s25
        %p285 = scmp.lt.s32.totalorder %s284, 18
        %s286 = scalar_select %p285, %s284, 18
        %p287 = scmp.lt.s32.totalorder %s24, 0
        %s288 = scalar_select %p287, %s24, 0
        %s289 = sadd.s32 %s288, %s286
        %s290 = smul.addr %s289, 4
        %s291 = scalar_lea.vmem %s1, %s290
        %s292 = smul.u32 19, %s25
        %p293 = scmp.lt.s32.totalorder %s24, 0
        %s294 = scalar_select %p293, %s24, 0
        %s295 = scalar_lea.vmem %s2, %s294
        %p296 = scmp.lt.s32.totalorder %s24, 0
        %s297 = scalar_select %p296, %s24, 0
        %s298 = scalar_lea.vmem %s3, %s297
        %s299 = smul.u32 64, %s23
        %p301 = scmp.eq.s32.totalorder %s25, 0
        // Predicated region
        $region37: #{_conv_affine_mm_jit.1} parent=35 // pred_check
          %p302 = pneg %p301
        $region38: #{_conv_affine_mm_jit.1} parent=35 // pred_check_branch
          %304 = sbr.rel (%p302) target = $region40
        $region39: #{_conv_affine_mm_jit.1} parent=35 // pred_region
          %vm305 = vcmask 523264
          %306 = vst.msk [vmem:[#allocation2] sm:$0xff] %vm305, 0.0
          %307 = vst.msk [vmem:[#allocation2 + $0x8] sm:$0xff] %vm305, 0.0
          %308 = vst.msk [vmem:[#allocation2 + $0x10] sm:$0xff] %vm305, 0.0
          %309 = vst.msk [vmem:[#allocation2 + $0x18] sm:$0xff] %vm305, 0.0
          %310 = vst.msk [vmem:[#allocation2 + $0x20] sm:$0xff] %vm305, 0.0
          %311 = vst.msk [vmem:[#allocation2 + $0x28] sm:$0xff] %vm305, 0.0
          %312 = vst.msk [vmem:[#allocation2 + $0x30] sm:$0xff] %vm305, 0.0
          %313 = vst.msk [vmem:[#allocation2 + $0x38] sm:$0xff] %vm305, 0.0
          %314 = vst.msk [vmem:[#allocation2 + $0x40] sm:$0xff] %vm305, 0.0
          %315 = vst.msk [vmem:[#allocation2 + $0x48] sm:$0xff] %vm305, 0.0
          %316 = vst.msk [vmem:[#allocation2 + $0x50] sm:$0xff] %vm305, 0.0
          %317 = vst.msk [vmem:[#allocation2 + $0x58] sm:$0xff] %vm305, 0.0
          %318 = vst.msk [vmem:[#allocation2 + $0x60] sm:$0xff] %vm305, 0.0
          %319 = vst.msk [vmem:[#allocation2 + $0x68] sm:$0xff] %vm305, 0.0
          %320 = vst.msk [vmem:[#allocation2 + $0x70] sm:$0xff] %vm305, 0.0
          %321 = vst.msk [vmem:[#allocation2 + $0x78] sm:$0xff] %vm305, 0.0
          %322 = vst.msk [vmem:[#allocation2 + $0x80] sm:$0xff] %vm305, 0.0
          %323 = vst.msk [vmem:[#allocation2 + $0x88] sm:$0xff] %vm305, 0.0
          %324 = vst.msk [vmem:[#allocation2 + $0x90] sm:$0xff] %vm305, 0.0
          %325 = vst.msk [vmem:[#allocation2 + $0x98] sm:$0xff] %vm305, 0.0
          %326 = vst.msk [vmem:[#allocation2 + $0xa0] sm:$0xff] %vm305, 0.0
          %327 = vst.msk [vmem:[#allocation2 + $0xa8] sm:$0xff] %vm305, 0.0
          %328 = vst.msk [vmem:[#allocation2 + $0xb0] sm:$0xff] %vm305, 0.0
          %329 = vst.msk [vmem:[#allocation2 + $0xb8] sm:$0xff] %vm305, 0.0
          %330 = vst.msk [vmem:[#allocation2 + $0xc0] sm:$0xff] %vm305, 0.0
          %331 = vst.msk [vmem:[#allocation2 + $0xc8] sm:$0xff] %vm305, 0.0
          %332 = vst.msk [vmem:[#allocation2 + $0xd0] sm:$0xff] %vm305, 0.0
          %333 = vst.msk [vmem:[#allocation2 + $0xd8] sm:$0xff] %vm305, 0.0
          %334 = vst.msk [vmem:[#allocation2 + $0xe0] sm:$0xff] %vm305, 0.0
          %335 = vst.msk [vmem:[#allocation2 + $0xe8] sm:$0xff] %vm305, 0.0
          %336 = vst.msk [vmem:[#allocation2 + $0xf0] sm:$0xff] %vm305, 0.0
          %337 = vst.msk [vmem:[#allocation2 + $0xf8] sm:$0xff] %vm305, 0.0
          %338 = vst.msk [vmem:[#allocation2 + $0x100] sm:$0xff] %vm305, 0.0
          %339 = vst.msk [vmem:[#allocation2 + $0x108] sm:$0xff] %vm305, 0.0
          %340 = vst.msk [vmem:[#allocation2 + $0x110] sm:$0xff] %vm305, 0.0
          %341 = vst.msk [vmem:[#allocation2 + $0x118] sm:$0xff] %vm305, 0.0
          %342 = vst.msk [vmem:[#allocation2 + $0x120] sm:$0xff] %vm305, 0.0
          %343 = vst.msk [vmem:[#allocation2 + $0x128] sm:$0xff] %vm305, 0.0
          %344 = vst.msk [vmem:[#allocation2 + $0x130] sm:$0xff] %vm305, 0.0
          %345 = vst.msk [vmem:[#allocation2 + $0x138] sm:$0xff] %vm305, 0.0
          %346 = vst.msk [vmem:[#allocation2 + $0x140] sm:$0xff] %vm305, 0.0
          %347 = vst.msk [vmem:[#allocation2 + $0x148] sm:$0xff] %vm305, 0.0
          %348 = vst.msk [vmem:[#allocation2 + $0x150] sm:$0xff] %vm305, 0.0
          %349 = vst.msk [vmem:[#allocation2 + $0x158] sm:$0xff] %vm305, 0.0
          %350 = vst.msk [vmem:[#allocation2 + $0x160] sm:$0xff] %vm305, 0.0
          %351 = vst.msk [vmem:[#allocation2 + $0x168] sm:$0xff] %vm305, 0.0
          %352 = vst.msk [vmem:[#allocation2 + $0x170] sm:$0xff] %vm305, 0.0
          %353 = vst.msk [vmem:[#allocation2 + $0x178] sm:$0xff] %vm305, 0.0
          %354 = vst.msk [vmem:[#allocation2 + $0x180] sm:$0xff] %vm305, 0.0
          %355 = vst.msk [vmem:[#allocation2 + $0x188] sm:$0xff] %vm305, 0.0
          %356 = vst.msk [vmem:[#allocation2 + $0x190] sm:$0xff] %vm305, 0.0
          %357 = vst.msk [vmem:[#allocation2 + $0x198] sm:$0xff] %vm305, 0.0
          %358 = vst.msk [vmem:[#allocation2 + $0x1a0] sm:$0xff] %vm305, 0.0
          %359 = vst.msk [vmem:[#allocation2 + $0x1a8] sm:$0xff] %vm305, 0.0
          %360 = vst.msk [vmem:[#allocation2 + $0x1b0] sm:$0xff] %vm305, 0.0
          %361 = vst.msk [vmem:[#allocation2 + $0x1b8] sm:$0xff] %vm305, 0.0
          %362 = vst.msk [vmem:[#allocation2 + $0x1c0] sm:$0xff] %vm305, 0.0
          %363 = vst.msk [vmem:[#allocation2 + $0x1c8] sm:$0xff] %vm305, 0.0
          %364 = vst.msk [vmem:[#allocation2 + $0x1d0] sm:$0xff] %vm305, 0.0
          %365 = vst.msk [vmem:[#allocation2 + $0x1d8] sm:$0xff] %vm305, 0.0
          %366 = vst.msk [vmem:[#allocation2 + $0x1e0] sm:$0xff] %vm305, 0.0
          %367 = vst.msk [vmem:[#allocation2 + $0x1e8] sm:$0xff] %vm305, 0.0
          %368 = vst.msk [vmem:[#allocation2 + $0x1f0] sm:$0xff] %vm305, 0.0
          %369 = vst.msk [vmem:[#allocation2 + $0x1f8] sm:$0xff] %vm305, 0.0
        $region40: #{_conv_affine_mm_jit.1} parent=35 // pred_fallthru
          _
        %v370 = vld [vmem:[#allocation2] sm:$0xff]
        %v371 = vld [vmem:[#allocation2 + $0x8] sm:$0xff]
        %v372 = vld [vmem:[#allocation2 + $0x10] sm:$0xff]
        %v373 = vld [vmem:[#allocation2 + $0x18] sm:$0xff]
        %v374 = vld [vmem:[#allocation2 + $0x20] sm:$0xff]
        %v375 = vld [vmem:[#allocation2 + $0x28] sm:$0xff]
        %v376 = vld [vmem:[#allocation2 + $0x30] sm:$0xff]
        %v377 = vld [vmem:[#allocation2 + $0x38] sm:$0xff]
        %v378 = vld [vmem:[#allocation2 + $0x40] sm:$0xff]
        %v379 = vld [vmem:[#allocation2 + $0x48] sm:$0xff]
        %v380 = vld [vmem:[#allocation2 + $0x50] sm:$0xff]
        %v381 = vld [vmem:[#allocation2 + $0x58] sm:$0xff]
        %v382 = vld [vmem:[#allocation2 + $0x60] sm:$0xff]
        %v383 = vld [vmem:[#allocation2 + $0x68] sm:$0xff]
        %v384 = vld [vmem:[#allocation2 + $0x70] sm:$0xff]
        %v385 = vld [vmem:[#allocation2 + $0x78] sm:$0xff]
        %v386 = vld [vmem:[#allocation2 + $0x80] sm:$0xff]
        %v387 = vld [vmem:[#allocation2 + $0x88] sm:$0xff]
        %v388 = vld [vmem:[#allocation2 + $0x90] sm:$0xff]
        %v389 = vld [vmem:[#allocation2 + $0x98] sm:$0xff]
        %v390 = vld [vmem:[#allocation2 + $0xa0] sm:$0xff]
        %v391 = vld [vmem:[#allocation2 + $0xa8] sm:$0xff]
        %v392 = vld [vmem:[#allocation2 + $0xb0] sm:$0xff]
        %v393 = vld [vmem:[#allocation2 + $0xb8] sm:$0xff]
        %v394 = vld [vmem:[#allocation2 + $0xc0] sm:$0xff]
        %v395 = vld [vmem:[#allocation2 + $0xc8] sm:$0xff]
        %v396 = vld [vmem:[#allocation2 + $0xd0] sm:$0xff]
        %v397 = vld [vmem:[#allocation2 + $0xd8] sm:$0xff]
        %v398 = vld [vmem:[#allocation2 + $0xe0] sm:$0xff]
        %v399 = vld [vmem:[#allocation2 + $0xe8] sm:$0xff]
        %v400 = vld [vmem:[#allocation2 + $0xf0] sm:$0xff]
        %v401 = vld [vmem:[#allocation2 + $0xf8] sm:$0xff]
        %v402 = vld [vmem:[#allocation2 + $0x100] sm:$0xff]
        %v403 = vld [vmem:[#allocation2 + $0x108] sm:$0xff]
        %v404 = vld [vmem:[#allocation2 + $0x110] sm:$0xff]
        %v405 = vld [vmem:[#allocation2 + $0x118] sm:$0xff]
        %v406 = vld [vmem:[#allocation2 + $0x120] sm:$0xff]
        %v407 = vld [vmem:[#allocation2 + $0x128] sm:$0xff]
        %v408 = vld [vmem:[#allocation2 + $0x130] sm:$0xff]
        %v409 = vld [vmem:[#allocation2 + $0x138] sm:$0xff]
        %v410 = vld [vmem:[#allocation2 + $0x140] sm:$0xff]
        %v411 = vld [vmem:[#allocation2 + $0x148] sm:$0xff]
        %v412 = vld [vmem:[#allocation2 + $0x150] sm:$0xff]
        %v413 = vld [vmem:[#allocation2 + $0x158] sm:$0xff]
        %v414 = vld [vmem:[#allocation2 + $0x160] sm:$0xff]
        %v415 = vld [vmem:[#allocation2 + $0x168] sm:$0xff]
        %v416 = vld [vmem:[#allocation2 + $0x170] sm:$0xff]
        %v417 = vld [vmem:[#allocation2 + $0x178] sm:$0xff]
        %v418 = vld [vmem:[#allocation2 + $0x180] sm:$0xff]
        %v419 = vld [vmem:[#allocation2 + $0x188] sm:$0xff]
        %v420 = vld [vmem:[#allocation2 + $0x190] sm:$0xff]
        %v421 = vld [vmem:[#allocation2 + $0x198] sm:$0xff]
        %v422 = vld [vmem:[#allocation2 + $0x1a0] sm:$0xff]
        %v423 = vld [vmem:[#allocation2 + $0x1a8] sm:$0xff]
        %v424 = vld [vmem:[#allocation2 + $0x1b0] sm:$0xff]
        %v425 = vld [vmem:[#allocation2 + $0x1b8] sm:$0xff]
        %v426 = vld [vmem:[#allocation2 + $0x1c0] sm:$0xff]
        %v427 = vld [vmem:[#allocation2 + $0x1c8] sm:$0xff]
        %v428 = vld [vmem:[#allocation2 + $0x1d0] sm:$0xff]
        %v429 = vld [vmem:[#allocation2 + $0x1d8] sm:$0xff]
        %v430 = vld [vmem:[#allocation2 + $0x1e0] sm:$0xff]
        %v431 = vld [vmem:[#allocation2 + $0x1e8] sm:$0xff]
        %v432 = vld [vmem:[#allocation2 + $0x1f0] sm:$0xff]
        %v433 = vld [vmem:[#allocation2 + $0x1f8] sm:$0xff]
        %v434 = vld [vmem:[%s281] sm:$0xff]
        %v435 = vld [vmem:[%s281 + $0x8] sm:$0xff]
        %v436 = vld [vmem:[%s281 + $0x10] sm:$0xff]
        %v437 = vld [vmem:[%s281 + $0x18] sm:$0xff]
        %v438 = vld [vmem:[%s281 + $0x20] sm:$0xff]
        %v439 = vld [vmem:[%s281 + $0x28] sm:$0xff]
        %v440 = vld [vmem:[%s281 + $0x30] sm:$0xff]
        %v441 = vld [vmem:[%s281 + $0x38] sm:$0xff]
        %v442 = vld [vmem:[%s281 + $0x40] sm:$0xff]
        %v443 = vld [vmem:[%s281 + $0x48] sm:$0xff]
        %v444 = vld [vmem:[%s281 + $0x50] sm:$0xff]
        %v445 = vld [vmem:[%s281 + $0x58] sm:$0xff]
        %v446 = vld [vmem:[%s281 + $0x60] sm:$0xff]
        %v447 = vld [vmem:[%s281 + $0x68] sm:$0xff]
        %v448 = vld [vmem:[%s281 + $0x70] sm:$0xff]
        %v449 = vld [vmem:[%s281 + $0x78] sm:$0xff]
        %v450 = vld [vmem:[%s281 + $0x80] sm:$0xff]
        %v451 = vld [vmem:[%s281 + $0x88] sm:$0xff]
        %v452 = vld [vmem:[%s281 + $0x90] sm:$0xff]
        %v453 = vld [vmem:[%s281 + $0x98] sm:$0xff]
        %v454 = vld [vmem:[%s281 + $0xa0] sm:$0xff]
        %v455 = vld [vmem:[%s281 + $0xa8] sm:$0xff]
        %v456 = vld [vmem:[%s281 + $0xb0] sm:$0xff]
        %v457 = vld [vmem:[%s281 + $0xb8] sm:$0xff]
        %v458 = vld [vmem:[%s281 + $0xc0] sm:$0xff]
        %v459 = vld [vmem:[%s281 + $0xc8] sm:$0xff]
        %v460 = vld [vmem:[%s281 + $0xd0] sm:$0xff]
        %v461 = vld [vmem:[%s281 + $0xd8] sm:$0xff]
        %v462 = vld [vmem:[%s281 + $0xe0] sm:$0xff]
        %v463 = vld [vmem:[%s281 + $0xe8] sm:$0xff]
        %v464 = vld [vmem:[%s281 + $0xf0] sm:$0xff]
        %v465 = vld [vmem:[%s281 + $0xf8] sm:$0xff]
        %v466 = vld [vmem:[%s281 + $0x100] sm:$0xff]
        %v467 = vld [vmem:[%s281 + $0x108] sm:$0xff]
        %v468 = vld [vmem:[%s281 + $0x110] sm:$0xff]
        %v469 = vld [vmem:[%s281 + $0x118] sm:$0xff]
        %v470 = vld [vmem:[%s281 + $0x120] sm:$0xff]
        %v471 = vld [vmem:[%s281 + $0x128] sm:$0xff]
        %v472 = vld [vmem:[%s281 + $0x130] sm:$0xff]
        %v473 = vld [vmem:[%s281 + $0x138] sm:$0xff]
        %v474 = vld [vmem:[%s281 + $0x140] sm:$0xff]
        %v475 = vld [vmem:[%s281 + $0x148] sm:$0xff]
        %v476 = vld [vmem:[%s281 + $0x150] sm:$0xff]
        %v477 = vld [vmem:[%s281 + $0x158] sm:$0xff]
        %v478 = vld [vmem:[%s281 + $0x160] sm:$0xff]
        %v479 = vld [vmem:[%s281 + $0x168] sm:$0xff]
        %v480 = vld [vmem:[%s281 + $0x170] sm:$0xff]
        %v481 = vld [vmem:[%s281 + $0x178] sm:$0xff]
        %v482 = vld [vmem:[%s281 + $0x180] sm:$0xff]
        %v483 = vld [vmem:[%s281 + $0x188] sm:$0xff]
        %v484 = vld [vmem:[%s281 + $0x190] sm:$0xff]
        %v485 = vld [vmem:[%s281 + $0x198] sm:$0xff]
        %v486 = vld [vmem:[%s281 + $0x1a0] sm:$0xff]
        %v487 = vld [vmem:[%s281 + $0x1a8] sm:$0xff]
        %v488 = vld [vmem:[%s281 + $0x1b0] sm:$0xff]
        %v489 = vld [vmem:[%s281 + $0x1b8] sm:$0xff]
        %v490 = vld [vmem:[%s281 + $0x1c0] sm:$0xff]
        %v491 = vld [vmem:[%s281 + $0x1c8] sm:$0xff]
        %v492 = vld [vmem:[%s281 + $0x1d0] sm:$0xff]
        %v493 = vld [vmem:[%s281 + $0x1d8] sm:$0xff]
        %v494 = vld [vmem:[%s281 + $0x1e0] sm:$0xff]
        %v495 = vld [vmem:[%s281 + $0x1e8] sm:$0xff]
        %v496 = vld [vmem:[%s281 + $0x1f0] sm:$0xff]
        %v497 = vld [vmem:[%s281 + $0x1f8] sm:$0xff]
        %v498 = vld [vmem:[%s291] sm:$0xf]
        %v499 = vld [vmem:[%s291 + $0x4] sm:$0xf]
        %v500 = vld [vmem:[%s291 + $0x8] sm:$0xf]
        %v501 = vld [vmem:[%s291 + $0xc] sm:$0xf]
        %v502 = vld [vmem:[%s291 + $0x10] sm:$0xf]
        %v503 = vld [vmem:[%s291 + $0x14] sm:$0xf]
        %v504 = vld [vmem:[%s291 + $0x18] sm:$0xf]
        %v505 = vld [vmem:[%s291 + $0x1c] sm:$0xf]
        %v506 = vld [vmem:[%s291 + $0x20] sm:$0xf]
        %v507 = vld [vmem:[%s291 + $0x24] sm:$0xf]
        %v508 = vld [vmem:[%s291 + $0x28] sm:$0xf]
        %v509 = vld [vmem:[%s291 + $0x2c] sm:$0xf]
        %v510 = vld [vmem:[%s291 + $0x30] sm:$0xf]
        %v511 = vld [vmem:[%s291 + $0x34] sm:$0xf]
        %v512 = vld [vmem:[%s291 + $0x38] sm:$0xf]
        %v513 = vld [vmem:[%s291 + $0x3c] sm:$0xf]
        %v514 = vld [vmem:[%s291 + $0x40] sm:$0xf]
        %v515 = vld [vmem:[%s291 + $0x44] sm:$0xf]
        %v516 = vld [vmem:[%s291 + $0x48] sm:$0x3]
        %v581 = vunpack.c.l.b16 %v434
        %v582 = vunpack.c.h.b16 %v434
        %v583 = vunpack.c.l.b16 %v435
        %v584 = vunpack.c.h.b16 %v435
        %v585 = vunpack.c.l.b16 %v436
        %v586 = vunpack.c.h.b16 %v436
        %v587 = vunpack.c.l.b16 %v437
        %v588 = vunpack.c.h.b16 %v437
        %v589 = vunpack.c.l.b16 %v438
        %v590 = vunpack.c.h.b16 %v438
        %v591 = vunpack.c.l.b16 %v439
        %v592 = vunpack.c.h.b16 %v439
        %v593 = vunpack.c.l.b16 %v440
        %v594 = vunpack.c.h.b16 %v440
        %v595 = vunpack.c.l.b16 %v441
        %v596 = vunpack.c.h.b16 %v441
        %v597 = vunpack.c.l.b16 %v442
        %v598 = vunpack.c.h.b16 %v442
        %v599 = vunpack.c.l.b16 %v443
        %v600 = vunpack.c.h.b16 %v443
        %v601 = vunpack.c.l.b16 %v444
        %v602 = vunpack.c.h.b16 %v444
        %v603 = vunpack.c.l.b16 %v445
        %v604 = vunpack.c.h.b16 %v445
        %v605 = vunpack.c.l.b16 %v446
        %v606 = vunpack.c.h.b16 %v446
        %v607 = vunpack.c.l.b16 %v447
        %v608 = vunpack.c.h.b16 %v447
        %v609 = vunpack.c.l.b16 %v448
        %v610 = vunpack.c.h.b16 %v448
        %v611 = vunpack.c.l.b16 %v449
        %v612 = vunpack.c.h.b16 %v449
        %v613 = vunpack.c.l.b16 %v450
        %v614 = vunpack.c.h.b16 %v450
        %v615 = vunpack.c.l.b16 %v451
        %v616 = vunpack.c.h.b16 %v451
        %v617 = vunpack.c.l.b16 %v452
        %v618 = vunpack.c.h.b16 %v452
        %v619 = vunpack.c.l.b16 %v453
        %v620 = vunpack.c.h.b16 %v453
        %v621 = vunpack.c.l.b16 %v454
        %v622 = vunpack.c.h.b16 %v454
        %v623 = vunpack.c.l.b16 %v455
        %v624 = vunpack.c.h.b16 %v455
        %v625 = vunpack.c.l.b16 %v456
        %v626 = vunpack.c.h.b16 %v456
        %v627 = vunpack.c.l.b16 %v457
        %v628 = vunpack.c.h.b16 %v457
        %v629 = vunpack.c.l.b16 %v458
        %v630 = vunpack.c.h.b16 %v458
        %v631 = vunpack.c.l.b16 %v459
        %v632 = vunpack.c.h.b16 %v459
        %v633 = vunpack.c.l.b16 %v460
        %v634 = vunpack.c.h.b16 %v460
        %v635 = vunpack.c.l.b16 %v461
        %v636 = vunpack.c.h.b16 %v461
        %v637 = vunpack.c.l.b16 %v462
        %v638 = vunpack.c.h.b16 %v462
        %v639 = vunpack.c.l.b16 %v463
        %v640 = vunpack.c.h.b16 %v463
        %v641 = vunpack.c.l.b16 %v464
        %v642 = vunpack.c.h.b16 %v464
        %v643 = vunpack.c.l.b16 %v465
        %v644 = vunpack.c.h.b16 %v465
        %v645 = vunpack.c.l.b16 %v466
        %v646 = vunpack.c.h.b16 %v466
        %v647 = vunpack.c.l.b16 %v467
        %v648 = vunpack.c.h.b16 %v467
        %v649 = vunpack.c.l.b16 %v468
        %v650 = vunpack.c.h.b16 %v468
        %v651 = vunpack.c.l.b16 %v469
        %v652 = vunpack.c.h.b16 %v469
        %v653 = vunpack.c.l.b16 %v470
        %v654 = vunpack.c.h.b16 %v470
        %v655 = vunpack.c.l.b16 %v471
        %v656 = vunpack.c.h.b16 %v471
        %v657 = vunpack.c.l.b16 %v472
        %v658 = vunpack.c.h.b16 %v472
        %v659 = vunpack.c.l.b16 %v473
        %v660 = vunpack.c.h.b16 %v473
        %v661 = vunpack.c.l.b16 %v474
        %v662 = vunpack.c.h.b16 %v474
        %v663 = vunpack.c.l.b16 %v475
        %v664 = vunpack.c.h.b16 %v475
        %v665 = vunpack.c.l.b16 %v476
        %v666 = vunpack.c.h.b16 %v476
        %v667 = vunpack.c.l.b16 %v477
        %v668 = vunpack.c.h.b16 %v477
        %v669 = vunpack.c.l.b16 %v478
        %v670 = vunpack.c.h.b16 %v478
        %v671 = vunpack.c.l.b16 %v479
        %v672 = vunpack.c.h.b16 %v479
        %v673 = vunpack.c.l.b16 %v480
        %v674 = vunpack.c.h.b16 %v480
        %v675 = vunpack.c.l.b16 %v481
        %v676 = vunpack.c.h.b16 %v481
        %v677 = vunpack.c.l.b16 %v482
        %v678 = vunpack.c.h.b16 %v482
        %v679 = vunpack.c.l.b16 %v483
        %v680 = vunpack.c.h.b16 %v483
        %v681 = vunpack.c.l.b16 %v484
        %v682 = vunpack.c.h.b16 %v484
        %v683 = vunpack.c.l.b16 %v485
        %v684 = vunpack.c.h.b16 %v485
        %v685 = vunpack.c.l.b16 %v486
        %v686 = vunpack.c.h.b16 %v486
        %v687 = vunpack.c.l.b16 %v487
        %v688 = vunpack.c.h.b16 %v487
        %v689 = vunpack.c.l.b16 %v488
        %v690 = vunpack.c.h.b16 %v488
        %v691 = vunpack.c.l.b16 %v489
        %v692 = vunpack.c.h.b16 %v489
        %v693 = vunpack.c.l.b16 %v490
        %v694 = vunpack.c.h.b16 %v490
        %v695 = vunpack.c.l.b16 %v491
        %v696 = vunpack.c.h.b16 %v491
        %v697 = vunpack.c.l.b16 %v492
        %v698 = vunpack.c.h.b16 %v492
        %v699 = vunpack.c.l.b16 %v493
        %v700 = vunpack.c.h.b16 %v493
        %v701 = vunpack.c.l.b16 %v494
        %v702 = vunpack.c.h.b16 %v494
        %v703 = vunpack.c.l.b16 %v495
        %v704 = vunpack.c.h.b16 %v495
        %v705 = vunpack.c.l.b16 %v496
        %v706 = vunpack.c.h.b16 %v496
        %v707 = vunpack.c.l.b16 %v497
        %v708 = vunpack.c.h.b16 %v497
        %v709 = vpack.c.b16 %v583, %v581
        %v710 = vpack.c.b16 %v584, %v582
        %v711 = vpack.c.b16 %v587, %v585
        %v712 = vpack.c.b16 %v588, %v586
        %v713 = vpack.c.b16 %v591, %v589
        %v714 = vpack.c.b16 %v592, %v590
        %v715 = vpack.c.b16 %v595, %v593
        %v716 = vpack.c.b16 %v596, %v594
        %v717 = vpack.c.b16 %v599, %v597
        %v718 = vpack.c.b16 %v600, %v598
        %v719 = vpack.c.b16 %v603, %v601
        %v720 = vpack.c.b16 %v604, %v602
        %v721 = vpack.c.b16 %v607, %v605
        %v722 = vpack.c.b16 %v608, %v606
        %v723 = vpack.c.b16 %v611, %v609
        %v724 = vpack.c.b16 %v612, %v610
        %v725 = vpack.c.b16 %v615, %v613
        %v726 = vpack.c.b16 %v616, %v614
        %v727 = vpack.c.b16 %v619, %v617
        %v728 = vpack.c.b16 %v620, %v618
        %v729 = vpack.c.b16 %v623, %v621
        %v730 = vpack.c.b16 %v624, %v622
        %v731 = vpack.c.b16 %v627, %v625
        %v732 = vpack.c.b16 %v628, %v626
        %v733 = vpack.c.b16 %v631, %v629
        %v734 = vpack.c.b16 %v632, %v630
        %v735 = vpack.c.b16 %v635, %v633
        %v736 = vpack.c.b16 %v636, %v634
        %v737 = vpack.c.b16 %v639, %v637
        %v738 = vpack.c.b16 %v640, %v638
        %v739 = vpack.c.b16 %v643, %v641
        %v740 = vpack.c.b16 %v644, %v642
        %v741 = vpack.c.b16 %v647, %v645
        %v742 = vpack.c.b16 %v648, %v646
        %v743 = vpack.c.b16 %v651, %v649
        %v744 = vpack.c.b16 %v652, %v650
        %v745 = vpack.c.b16 %v655, %v653
        %v746 = vpack.c.b16 %v656, %v654
        %v747 = vpack.c.b16 %v659, %v657
        %v748 = vpack.c.b16 %v660, %v658
        %v749 = vpack.c.b16 %v663, %v661
        %v750 = vpack.c.b16 %v664, %v662
        %v751 = vpack.c.b16 %v667, %v665
        %v752 = vpack.c.b16 %v668, %v666
        %v753 = vpack.c.b16 %v671, %v669
        %v754 = vpack.c.b16 %v672, %v670
        %v755 = vpack.c.b16 %v675, %v673
        %v756 = vpack.c.b16 %v676, %v674
        %v757 = vpack.c.b16 %v679, %v677
        %v758 = vpack.c.b16 %v680, %v678
        %v759 = vpack.c.b16 %v683, %v681
        %v760 = vpack.c.b16 %v684, %v682
        %v761 = vpack.c.b16 %v687, %v685
        %v762 = vpack.c.b16 %v688, %v686
        %v763 = vpack.c.b16 %v691, %v689
        %v764 = vpack.c.b16 %v692, %v690
        %v765 = vpack.c.b16 %v695, %v693
        %v766 = vpack.c.b16 %v696, %v694
        %v767 = vpack.c.b16 %v699, %v697
        %v768 = vpack.c.b16 %v700, %v698
        %v769 = vpack.c.b16 %v703, %v701
        %v770 = vpack.c.b16 %v704, %v702
        %v771 = vpack.c.b16 %v707, %v705
        %v772 = vpack.c.b16 %v708, %v706
        %v824 = vunpack.c.l.b16 %v498
        %v825 = vunpack.c.l.b16 %v499
        %v826 = vunpack.c.l.b16 %v500
        %v827 = vunpack.c.l.b16 %v501
        %v828 = vunpack.c.l.b16 %v502
        %v829 = vunpack.c.l.b16 %v503
        %v830 = vunpack.c.l.b16 %v504
        %v831 = vunpack.c.l.b16 %v505
        %v832 = vunpack.c.l.b16 %v506
        %v833 = vunpack.c.l.b16 %v507
        %v834 = vunpack.c.l.b16 %v508
        %v835 = vunpack.c.l.b16 %v509
        %v836 = vunpack.c.l.b16 %v510
        %v837 = vunpack.c.l.b16 %v511
        %v838 = vunpack.c.l.b16 %v512
        %v839 = vunpack.c.l.b16 %v513
        %v840 = vunpack.c.l.b16 %v514
        %v841 = vunpack.c.l.b16 %v515
        %v842 = vunpack.c.l.b16 %v516
        %v843 = vpack.c.b16 %v825, %v824
        %v844 = vpack.c.b16 %v827, %v826
        %v845 = vpack.c.b16 %v829, %v828
        %v846 = vpack.c.b16 %v831, %v830
        %v847 = vpack.c.b16 %v833, %v832
        %v848 = vpack.c.b16 %v835, %v834
        %v849 = vpack.c.b16 %v837, %v836
        %v850 = vpack.c.b16 %v839, %v838
        %v851 = vpack.c.b16 %v841, %v840
        %v852 = vpack.c.b16 %v842, %v842
        %vm862 = vcmask 154624
        %v864 = vsel %vm862, %v710, 0
        %v867 = vsel %vm862, %v712, 0
        %v870 = vsel %vm862, %v714, 0
        %v873 = vsel %vm862, %v716, 0
        %v876 = vsel %vm862, %v718, 0
        %v879 = vsel %vm862, %v720, 0
        %v882 = vsel %vm862, %v722, 0
        %v885 = vsel %vm862, %v724, 0
        %v888 = vsel %vm862, %v726, 0
        %v891 = vsel %vm862, %v728, 0
        %v894 = vsel %vm862, %v730, 0
        %v897 = vsel %vm862, %v732, 0
        %v900 = vsel %vm862, %v734, 0
        %v903 = vsel %vm862, %v736, 0
        %v906 = vsel %vm862, %v738, 0
        %v909 = vsel %vm862, %v740, 0
        %v912 = vsel %vm862, %v742, 0
        %v915 = vsel %vm862, %v744, 0
        %v918 = vsel %vm862, %v746, 0
        %v921 = vsel %vm862, %v748, 0
        %v924 = vsel %vm862, %v750, 0
        %v927 = vsel %vm862, %v752, 0
        %v930 = vsel %vm862, %v754, 0
        %v933 = vsel %vm862, %v756, 0
        %v936 = vsel %vm862, %v758, 0
        %v939 = vsel %vm862, %v760, 0
        %v942 = vsel %vm862, %v762, 0
        %v945 = vsel %vm862, %v764, 0
        %v948 = vsel %vm862, %v766, 0
        %v951 = vsel %vm862, %v768, 0
        %v954 = vsel %vm862, %v770, 0
        %v957 = vsel %vm862, %v772, 0
        %vm959 = vcmask 1040384
        %vm960 = vcmask 1041408
        %v961 = vsel %vm959, 4294967295, 65535
        %v962 = vsel %vm960, %v961, 0
        %v964 = vand.u32 %v852, %v962
        %966 = vmatprep.subr.bf16.mxu0 0
        %967 = vmatpush1.bf16.msra.mxu0 %v850
        %968 = vmatprep.subr.bf16.mxu0 0
        %969 = vmatpush1.bf16.msra.mxu0 %v849
        %970 = vmatprep.subr.bf16.mxu0 0
        %971 = vmatpush1.bf16.msra.mxu0 %v848
        %972 = vmatprep.subr.bf16.mxu0 0
        %973 = vmatpush1.bf16.msra.mxu0 %v847
        %974 = vmatprep.subr.bf16.mxu0 0
        %975 = vmatpush1.bf16.msra.mxu0 %v846
        %976 = vmatprep.subr.bf16.mxu0 0
        %977 = vmatpush1.bf16.msra.mxu0 %v845
        %978 = vmatprep.subr.bf16.mxu0 0
        %979 = vmatpush1.bf16.msra.mxu0 %v844
        %980 = vmatprep.subr.bf16.mxu0 0
        %981 = vmatpush1.bf16.msra.mxu0 %v843
        %982 = vmatprep.subr.bf16.mxu0 0
        %983 = vmatpush2.bf16.msra.mxu0 0
        %984 = vmatprep.subr.bf16.mxu0 0
        %985 = vmatpush2.bf16.msra.mxu0 0
        %986 = vmatprep.subr.bf16.mxu0 0
        %987 = vmatpush2.bf16.msra.mxu0 0
        %988 = vmatprep.subr.bf16.mxu0 0
        %989 = vmatpush2.bf16.msra.mxu0 0
        %990 = vmatprep.subr.bf16.mxu0 0
        %991 = vmatpush2.bf16.msra.mxu0 0
        %992 = vmatprep.subr.bf16.mxu0 0
        %993 = vmatpush2.bf16.msra.mxu0 0
        %994 = vmatprep.subr.bf16.mxu0 0
        %995 = vmatpush2.bf16.msra.mxu0 %v964
        %996 = vmatprep.subr.bf16.mxu0 0
        %997 = vmatpush2.bf16.msra.mxu0 %v851
        %998 = vmatprep.mubr.bf16.mxu0 %v864
        %999 = vmatmul.mubr.bf16.gmra.mxu0 %v709
        %v1000 = vpop.f32.mrf.mxu0
        %v1001 = vadd.f32 0.0, %v1000
        %v1002 = vpop.f32.mrf.mxu0
        %v1003 = vpop.f32.mrf.mxu0
        %v1004 = vadd.f32 0.0, %v1003
        %v1005 = vpop.f32.mrf.mxu0
        %1006 = vmatprep.mubr.bf16.mxu0 %v867
        %1007 = vmatmul.mubr.bf16.gmra.mxu0 %v711
        %v1008 = vpop.f32.mrf.mxu0
        %v1009 = vadd.f32 0.0, %v1008
        %v1010 = vpop.f32.mrf.mxu0
        %v1011 = vpop.f32.mrf.mxu0
        %v1012 = vadd.f32 0.0, %v1011
        %v1013 = vpop.f32.mrf.mxu0
        %1014 = vmatprep.mubr.bf16.mxu0 %v870
        %1015 = vmatmul.mubr.bf16.gmra.mxu0 %v713
        %v1016 = vpop.f32.mrf.mxu0
        %v1017 = vadd.f32 0.0, %v1016
        %v1018 = vpop.f32.mrf.mxu0
        %v1019 = vpop.f32.mrf.mxu0
        %v1020 = vadd.f32 0.0, %v1019
        %v1021 = vpop.f32.mrf.mxu0
        %1022 = vmatprep.mubr.bf16.mxu0 %v873
        %1023 = vmatmul.mubr.bf16.gmra.mxu0 %v715
        %v1024 = vpop.f32.mrf.mxu0
        %v1025 = vadd.f32 0.0, %v1024
        %v1026 = vpop.f32.mrf.mxu0
        %v1027 = vpop.f32.mrf.mxu0
        %v1028 = vadd.f32 0.0, %v1027
        %v1029 = vpop.f32.mrf.mxu0
        %1030 = vmatprep.mubr.bf16.mxu0 %v876
        %1031 = vmatmul.mubr.bf16.gmra.mxu0 %v717
        %v1032 = vpop.f32.mrf.mxu0
        %v1033 = vadd.f32 0.0, %v1032
        %v1034 = vpop.f32.mrf.mxu0
        %v1035 = vpop.f32.mrf.mxu0
        %v1036 = vadd.f32 0.0, %v1035
        %v1037 = vpop.f32.mrf.mxu0
        %1038 = vmatprep.mubr.bf16.mxu0 %v879
        %1039 = vmatmul.mubr.bf16.gmra.mxu0 %v719
        %v1040 = vpop.f32.mrf.mxu0
        %v1041 = vadd.f32 0.0, %v1040
        %v1042 = vpop.f32.mrf.mxu0
        %v1043 = vpop.f32.mrf.mxu0
        %v1044 = vadd.f32 0.0, %v1043
        %v1045 = vpop.f32.mrf.mxu0
        %1046 = vmatprep.mubr.bf16.mxu0 %v882
        %1047 = vmatmul.mubr.bf16.gmra.mxu0 %v721
        %v1048 = vpop.f32.mrf.mxu0
        %v1049 = vadd.f32 0.0, %v1048
        %v1050 = vpop.f32.mrf.mxu0
        %v1051 = vpop.f32.mrf.mxu0
        %v1052 = vadd.f32 0.0, %v1051
        %v1053 = vpop.f32.mrf.mxu0
        %1054 = vmatprep.mubr.bf16.mxu0 %v885
        %1055 = vmatmul.mubr.bf16.gmra.mxu0 %v723
        %v1056 = vpop.f32.mrf.mxu0
        %v1057 = vadd.f32 0.0, %v1056
        %v1058 = vpop.f32.mrf.mxu0
        %v1059 = vpop.f32.mrf.mxu0
        %v1060 = vadd.f32 0.0, %v1059
        %v1061 = vpop.f32.mrf.mxu0
        %1062 = vmatprep.mubr.bf16.mxu0 %v888
        %1063 = vmatmul.mubr.bf16.gmra.mxu0 %v725
        %v1064 = vpop.f32.mrf.mxu0
        %v1065 = vadd.f32 0.0, %v1064
        %v1066 = vpop.f32.mrf.mxu0
        %v1067 = vpop.f32.mrf.mxu0
        %v1068 = vadd.f32 0.0, %v1067
        %v1069 = vpop.f32.mrf.mxu0
        %1070 = vmatprep.mubr.bf16.mxu0 %v891
        %1071 = vmatmul.mubr.bf16.gmra.mxu0 %v727
        %v1072 = vpop.f32.mrf.mxu0
        %v1073 = vadd.f32 0.0, %v1072
        %v1074 = vpop.f32.mrf.mxu0
        %v1075 = vpop.f32.mrf.mxu0
        %v1076 = vadd.f32 0.0, %v1075
        %v1077 = vpop.f32.mrf.mxu0
        %1078 = vmatprep.mubr.bf16.mxu0 %v894
        %1079 = vmatmul.mubr.bf16.gmra.mxu0 %v729
        %v1080 = vpop.f32.mrf.mxu0
        %v1081 = vadd.f32 0.0, %v1080
        %v1082 = vpop.f32.mrf.mxu0
        %v1083 = vpop.f32.mrf.mxu0
        %v1084 = vadd.f32 0.0, %v1083
        %v1085 = vpop.f32.mrf.mxu0
        %1086 = vmatprep.mubr.bf16.mxu0 %v897
        %1087 = vmatmul.mubr.bf16.gmra.mxu0 %v731
        %v1088 = vpop.f32.mrf.mxu0
        %v1089 = vadd.f32 0.0, %v1088
        %v1090 = vpop.f32.mrf.mxu0
        %v1091 = vpop.f32.mrf.mxu0
        %v1092 = vadd.f32 0.0, %v1091
        %v1093 = vpop.f32.mrf.mxu0
        %1094 = vmatprep.mubr.bf16.mxu0 %v900
        %1095 = vmatmul.mubr.bf16.gmra.mxu0 %v733
        %v1096 = vpop.f32.mrf.mxu0
        %v1097 = vadd.f32 0.0, %v1096
        %v1098 = vpop.f32.mrf.mxu0
        %v1099 = vpop.f32.mrf.mxu0
        %v1100 = vadd.f32 0.0, %v1099
        %v1101 = vpop.f32.mrf.mxu0
        %1102 = vmatprep.mubr.bf16.mxu0 %v903
        %1103 = vmatmul.mubr.bf16.gmra.mxu0 %v735
        %v1104 = vpop.f32.mrf.mxu0
        %v1105 = vadd.f32 0.0, %v1104
        %v1106 = vpop.f32.mrf.mxu0
        %v1107 = vpop.f32.mrf.mxu0
        %v1108 = vadd.f32 0.0, %v1107
        %v1109 = vpop.f32.mrf.mxu0
        %1110 = vmatprep.mubr.bf16.mxu0 %v906
        %1111 = vmatmul.mubr.bf16.gmra.mxu0 %v737
        %v1112 = vpop.f32.mrf.mxu0
        %v1113 = vadd.f32 0.0, %v1112
        %v1114 = vpop.f32.mrf.mxu0
        %v1115 = vpop.f32.mrf.mxu0
        %v1116 = vadd.f32 0.0, %v1115
        %v1117 = vpop.f32.mrf.mxu0
        %1118 = vmatprep.mubr.bf16.mxu0 %v909
        %1119 = vmatmul.mubr.bf16.gmra.mxu0 %v739
        %v1120 = vpop.f32.mrf.mxu0
        %v1121 = vadd.f32 0.0, %v1120
        %v1122 = vpop.f32.mrf.mxu0
        %v1123 = vpop.f32.mrf.mxu0
        %v1124 = vadd.f32 0.0, %v1123
        %v1125 = vpop.f32.mrf.mxu0
        %1126 = vmatprep.mubr.bf16.mxu0 %v912
        %1127 = vmatmul.mubr.bf16.gmra.mxu0 %v741
        %v1128 = vpop.f32.mrf.mxu0
        %v1129 = vadd.f32 0.0, %v1128
        %v1130 = vpop.f32.mrf.mxu0
        %v1131 = vpop.f32.mrf.mxu0
        %v1132 = vadd.f32 0.0, %v1131
        %v1133 = vpop.f32.mrf.mxu0
        %1134 = vmatprep.mubr.bf16.mxu0 %v915
        %1135 = vmatmul.mubr.bf16.gmra.mxu0 %v743
        %v1136 = vpop.f32.mrf.mxu0
        %v1137 = vadd.f32 0.0, %v1136
        %v1138 = vpop.f32.mrf.mxu0
        %v1139 = vpop.f32.mrf.mxu0
        %v1140 = vadd.f32 0.0, %v1139
        %v1141 = vpop.f32.mrf.mxu0
        %1142 = vmatprep.mubr.bf16.mxu0 %v918
        %1143 = vmatmul.mubr.bf16.gmra.mxu0 %v745
        %v1144 = vpop.f32.mrf.mxu0
        %v1145 = vadd.f32 0.0, %v1144
        %v1146 = vpop.f32.mrf.mxu0
        %v1147 = vpop.f32.mrf.mxu0
        %v1148 = vadd.f32 0.0, %v1147
        %v1149 = vpop.f32.mrf.mxu0
        %1150 = vmatprep.mubr.bf16.mxu0 %v921
        %1151 = vmatmul.mubr.bf16.gmra.mxu0 %v747
        %v1152 = vpop.f32.mrf.mxu0
        %v1153 = vadd.f32 0.0, %v1152
        %v1154 = vpop.f32.mrf.mxu0
        %v1155 = vpop.f32.mrf.mxu0
        %v1156 = vadd.f32 0.0, %v1155
        %v1157 = vpop.f32.mrf.mxu0
        %1158 = vmatprep.mubr.bf16.mxu0 %v924
        %1159 = vmatmul.mubr.bf16.gmra.mxu0 %v749
        %v1160 = vpop.f32.mrf.mxu0
        %v1161 = vadd.f32 0.0, %v1160
        %v1162 = vpop.f32.mrf.mxu0
        %v1163 = vpop.f32.mrf.mxu0
        %v1164 = vadd.f32 0.0, %v1163
        %v1165 = vpop.f32.mrf.mxu0
        %1166 = vmatprep.mubr.bf16.mxu0 %v927
        %1167 = vmatmul.mubr.bf16.gmra.mxu0 %v751
        %v1168 = vpop.f32.mrf.mxu0
        %v1169 = vadd.f32 0.0, %v1168
        %v1170 = vpop.f32.mrf.mxu0
        %v1171 = vpop.f32.mrf.mxu0
        %v1172 = vadd.f32 0.0, %v1171
        %v1173 = vpop.f32.mrf.mxu0
        %1174 = vmatprep.mubr.bf16.mxu0 %v930
        %1175 = vmatmul.mubr.bf16.gmra.mxu0 %v753
        %v1176 = vpop.f32.mrf.mxu0
        %v1177 = vadd.f32 0.0, %v1176
        %v1178 = vpop.f32.mrf.mxu0
        %v1179 = vpop.f32.mrf.mxu0
        %v1180 = vadd.f32 0.0, %v1179
        %v1181 = vpop.f32.mrf.mxu0
        %1182 = vmatprep.mubr.bf16.mxu0 %v933
        %1183 = vmatmul.mubr.bf16.gmra.mxu0 %v755
        %v1184 = vpop.f32.mrf.mxu0
        %v1185 = vadd.f32 0.0, %v1184
        %v1186 = vpop.f32.mrf.mxu0
        %v1187 = vpop.f32.mrf.mxu0
        %v1188 = vadd.f32 0.0, %v1187
        %v1189 = vpop.f32.mrf.mxu0
        %1190 = vmatprep.mubr.bf16.mxu0 %v936
        %1191 = vmatmul.mubr.bf16.gmra.mxu0 %v757
        %v1192 = vpop.f32.mrf.mxu0
        %v1193 = vadd.f32 0.0, %v1192
        %v1194 = vpop.f32.mrf.mxu0
        %v1195 = vpop.f32.mrf.mxu0
        %v1196 = vadd.f32 0.0, %v1195
        %v1197 = vpop.f32.mrf.mxu0
        %1198 = vmatprep.mubr.bf16.mxu0 %v939
        %1199 = vmatmul.mubr.bf16.gmra.mxu0 %v759
        %v1200 = vpop.f32.mrf.mxu0
        %v1201 = vadd.f32 0.0, %v1200
        %v1202 = vpop.f32.mrf.mxu0
        %v1203 = vpop.f32.mrf.mxu0
        %v1204 = vadd.f32 0.0, %v1203
        %v1205 = vpop.f32.mrf.mxu0
        %1206 = vmatprep.mubr.bf16.mxu0 %v942
        %1207 = vmatmul.mubr.bf16.gmra.mxu0 %v761
        %v1208 = vpop.f32.mrf.mxu0
        %v1209 = vadd.f32 0.0, %v1208
        %v1210 = vpop.f32.mrf.mxu0
        %v1211 = vpop.f32.mrf.mxu0
        %v1212 = vadd.f32 0.0, %v1211
        %v1213 = vpop.f32.mrf.mxu0
        %1214 = vmatprep.mubr.bf16.mxu0 %v945
        %1215 = vmatmul.mubr.bf16.gmra.mxu0 %v763
        %v1216 = vpop.f32.mrf.mxu0
        %v1217 = vadd.f32 0.0, %v1216
        %v1218 = vpop.f32.mrf.mxu0
        %v1219 = vpop.f32.mrf.mxu0
        %v1220 = vadd.f32 0.0, %v1219
        %v1221 = vpop.f32.mrf.mxu0
        %1222 = vmatprep.mubr.bf16.mxu0 %v948
        %1223 = vmatmul.mubr.bf16.gmra.mxu0 %v765
        %v1224 = vpop.f32.mrf.mxu0
        %v1225 = vadd.f32 0.0, %v1224
        %v1226 = vpop.f32.mrf.mxu0
        %v1227 = vpop.f32.mrf.mxu0
        %v1228 = vadd.f32 0.0, %v1227
        %v1229 = vpop.f32.mrf.mxu0
        %1230 = vmatprep.mubr.bf16.mxu0 %v951
        %1231 = vmatmul.mubr.bf16.gmra.mxu0 %v767
        %v1232 = vpop.f32.mrf.mxu0
        %v1233 = vadd.f32 0.0, %v1232
        %v1234 = vpop.f32.mrf.mxu0
        %v1235 = vpop.f32.mrf.mxu0
        %v1236 = vadd.f32 0.0, %v1235
        %v1237 = vpop.f32.mrf.mxu0
        %1238 = vmatprep.mubr.bf16.mxu0 %v954
        %1239 = vmatmul.mubr.bf16.gmra.mxu0 %v769
        %v1240 = vpop.f32.mrf.mxu0
        %v1241 = vadd.f32 0.0, %v1240
        %v1242 = vpop.f32.mrf.mxu0
        %v1243 = vpop.f32.mrf.mxu0
        %v1244 = vadd.f32 0.0, %v1243
        %v1245 = vpop.f32.mrf.mxu0
        %1246 = vmatprep.mubr.bf16.mxu0 %v957
        %1247 = vmatmul.mubr.bf16.gmra.mxu0 %v771
        %v1248 = vpop.f32.mrf.mxu0
        %v1249 = vadd.f32 0.0, %v1248
        %v1250 = vpop.f32.mrf.mxu0
        %v1251 = vpop.f32.mrf.mxu0
        %v1252 = vadd.f32 0.0, %v1251
        %v1253 = vpop.f32.mrf.mxu0
        %1254 = vdwg.mxu0
        %v1255 = vadd.f32 %v370, %v1001
        %v1256 = vadd.f32 %v371, %v1004
        %v1257 = vadd.f32 %v372, %v1009
        %v1258 = vadd.f32 %v373, %v1012
        %v1259 = vadd.f32 %v374, %v1017
        %v1260 = vadd.f32 %v375, %v1020
        %v1261 = vadd.f32 %v376, %v1025
        %v1262 = vadd.f32 %v377, %v1028
        %v1263 = vadd.f32 %v378, %v1033
        %v1264 = vadd.f32 %v379, %v1036
        %v1265 = vadd.f32 %v380, %v1041
        %v1266 = vadd.f32 %v381, %v1044
        %v1267 = vadd.f32 %v382, %v1049
        %v1268 = vadd.f32 %v383, %v1052
        %v1269 = vadd.f32 %v384, %v1057
        %v1270 = vadd.f32 %v385, %v1060
        %v1271 = vadd.f32 %v386, %v1065
        %v1272 = vadd.f32 %v387, %v1068
        %v1273 = vadd.f32 %v388, %v1073
        %v1274 = vadd.f32 %v389, %v1076
        %v1275 = vadd.f32 %v390, %v1081
        %v1276 = vadd.f32 %v391, %v1084
        %v1277 = vadd.f32 %v392, %v1089
        %v1278 = vadd.f32 %v393, %v1092
        %v1279 = vadd.f32 %v394, %v1097
        %v1280 = vadd.f32 %v395, %v1100
        %v1281 = vadd.f32 %v396, %v1105
        %v1282 = vadd.f32 %v397, %v1108
        %v1283 = vadd.f32 %v398, %v1113
        %v1284 = vadd.f32 %v399, %v1116
        %v1285 = vadd.f32 %v400, %v1121
        %v1286 = vadd.f32 %v401, %v1124
        %v1287 = vadd.f32 %v402, %v1129
        %v1288 = vadd.f32 %v403, %v1132
        %v1289 = vadd.f32 %v404, %v1137
        %v1290 = vadd.f32 %v405, %v1140
        %v1291 = vadd.f32 %v406, %v1145
        %v1292 = vadd.f32 %v407, %v1148
        %v1293 = vadd.f32 %v408, %v1153
        %v1294 = vadd.f32 %v409, %v1156
        %v1295 = vadd.f32 %v410, %v1161
        %v1296 = vadd.f32 %v411, %v1164
        %v1297 = vadd.f32 %v412, %v1169
        %v1298 = vadd.f32 %v413, %v1172
        %v1299 = vadd.f32 %v414, %v1177
        %v1300 = vadd.f32 %v415, %v1180
        %v1301 = vadd.f32 %v416, %v1185
        %v1302 = vadd.f32 %v417, %v1188
        %v1303 = vadd.f32 %v418, %v1193
        %v1304 = vadd.f32 %v419, %v1196
        %v1305 = vadd.f32 %v420, %v1201
        %v1306 = vadd.f32 %v421, %v1204
        %v1307 = vadd.f32 %v422, %v1209
        %v1308 = vadd.f32 %v423, %v1212
        %v1309 = vadd.f32 %v424, %v1217
        %v1310 = vadd.f32 %v425, %v1220
        %v1311 = vadd.f32 %v426, %v1225
        %v1312 = vadd.f32 %v427, %v1228
        %v1313 = vadd.f32 %v428, %v1233
        %v1314 = vadd.f32 %v429, %v1236
        %v1315 = vadd.f32 %v430, %v1241
        %v1316 = vadd.f32 %v431, %v1244
        %v1317 = vadd.f32 %v432, %v1249
        %v1318 = vadd.f32 %v433, %v1252
        %vm1319 = vcmask 523264
        %1320 = vst.msk [vmem:[#allocation2] sm:$0xff] %vm1319, %v1255
        %1321 = vst.msk [vmem:[#allocation2 + $0x8] sm:$0xff] %vm1319, %v1256
        %1322 = vst.msk [vmem:[#allocation2 + $0x10] sm:$0xff] %vm1319, %v1257
        %1323 = vst.msk [vmem:[#allocation2 + $0x18] sm:$0xff] %vm1319, %v1258
        %1324 = vst.msk [vmem:[#allocation2 + $0x20] sm:$0xff] %vm1319, %v1259
        %1325 = vst.msk [vmem:[#allocation2 + $0x28] sm:$0xff] %vm1319, %v1260
        %1326 = vst.msk [vmem:[#allocation2 + $0x30] sm:$0xff] %vm1319, %v1261
        %1327 = vst.msk [vmem:[#allocation2 + $0x38] sm:$0xff] %vm1319, %v1262
        %1328 = vst.msk [vmem:[#allocation2 + $0x40] sm:$0xff] %vm1319, %v1263
        %1329 = vst.msk [vmem:[#allocation2 + $0x48] sm:$0xff] %vm1319, %v1264
        %1330 = vst.msk [vmem:[#allocation2 + $0x50] sm:$0xff] %vm1319, %v1265
        %1331 = vst.msk [vmem:[#allocation2 + $0x58] sm:$0xff] %vm1319, %v1266
        %1332 = vst.msk [vmem:[#allocation2 + $0x60] sm:$0xff] %vm1319, %v1267
        %1333 = vst.msk [vmem:[#allocation2 + $0x68] sm:$0xff] %vm1319, %v1268
        %1334 = vst.msk [vmem:[#allocation2 + $0x70] sm:$0xff] %vm1319, %v1269
        %1335 = vst.msk [vmem:[#allocation2 + $0x78] sm:$0xff] %vm1319, %v1270
        %1336 = vst.msk [vmem:[#allocation2 + $0x80] sm:$0xff] %vm1319, %v1271
        %1337 = vst.msk [vmem:[#allocation2 + $0x88] sm:$0xff] %vm1319, %v1272
        %1338 = vst.msk [vmem:[#allocation2 + $0x90] sm:$0xff] %vm1319, %v1273
        %1339 = vst.msk [vmem:[#allocation2 + $0x98] sm:$0xff] %vm1319, %v1274
        %1340 = vst.msk [vmem:[#allocation2 + $0xa0] sm:$0xff] %vm1319, %v1275
        %1341 = vst.msk [vmem:[#allocation2 + $0xa8] sm:$0xff] %vm1319, %v1276
        %1342 = vst.msk [vmem:[#allocation2 + $0xb0] sm:$0xff] %vm1319, %v1277
        %1343 = vst.msk [vmem:[#allocation2 + $0xb8] sm:$0xff] %vm1319, %v1278
        %1344 = vst.msk [vmem:[#allocation2 + $0xc0] sm:$0xff] %vm1319, %v1279
        %1345 = vst.msk [vmem:[#allocation2 + $0xc8] sm:$0xff] %vm1319, %v1280
        %1346 = vst.msk [vmem:[#allocation2 + $0xd0] sm:$0xff] %vm1319, %v1281
        %1347 = vst.msk [vmem:[#allocation2 + $0xd8] sm:$0xff] %vm1319, %v1282
        %1348 = vst.msk [vmem:[#allocation2 + $0xe0] sm:$0xff] %vm1319, %v1283
        %1349 = vst.msk [vmem:[#allocation2 + $0xe8] sm:$0xff] %vm1319, %v1284
        %1350 = vst.msk [vmem:[#allocation2 + $0xf0] sm:$0xff] %vm1319, %v1285
        %1351 = vst.msk [vmem:[#allocation2 + $0xf8] sm:$0xff] %vm1319, %v1286
        %1352 = vst.msk [vmem:[#allocation2 + $0x100] sm:$0xff] %vm1319, %v1287
        %1353 = vst.msk [vmem:[#allocation2 + $0x108] sm:$0xff] %vm1319, %v1288
        %1354 = vst.msk [vmem:[#allocation2 + $0x110] sm:$0xff] %vm1319, %v1289
        %1355 = vst.msk [vmem:[#allocation2 + $0x118] sm:$0xff] %vm1319, %v1290
        %1356 = vst.msk [vmem:[#allocation2 + $0x120] sm:$0xff] %vm1319, %v1291
        %1357 = vst.msk [vmem:[#allocation2 + $0x128] sm:$0xff] %vm1319, %v1292
        %1358 = vst.msk [vmem:[#allocation2 + $0x130] sm:$0xff] %vm1319, %v1293
        %1359 = vst.msk [vmem:[#allocation2 + $0x138] sm:$0xff] %vm1319, %v1294
        %1360 = vst.msk [vmem:[#allocation2 + $0x140] sm:$0xff] %vm1319, %v1295
        %1361 = vst.msk [vmem:[#allocation2 + $0x148] sm:$0xff] %vm1319, %v1296
        %1362 = vst.msk [vmem:[#allocation2 + $0x150] sm:$0xff] %vm1319, %v1297
        %1363 = vst.msk [vmem:[#allocation2 + $0x158] sm:$0xff] %vm1319, %v1298
        %1364 = vst.msk [vmem:[#allocation2 + $0x160] sm:$0xff] %vm1319, %v1299
        %1365 = vst.msk [vmem:[#allocation2 + $0x168] sm:$0xff] %vm1319, %v1300
        %1366 = vst.msk [vmem:[#allocation2 + $0x170] sm:$0xff] %vm1319, %v1301
        %1367 = vst.msk [vmem:[#allocation2 + $0x178] sm:$0xff] %vm1319, %v1302
        %1368 = vst.msk [vmem:[#allocation2 + $0x180] sm:$0xff] %vm1319, %v1303
        %1369 = vst.msk [vmem:[#allocation2 + $0x188] sm:$0xff] %vm1319, %v1304
        %1370 = vst.msk [vmem:[#allocation2 + $0x190] sm:$0xff] %vm1319, %v1305
        %1371 = vst.msk [vmem:[#allocation2 + $0x198] sm:$0xff] %vm1319, %v1306
        %1372 = vst.msk [vmem:[#allocation2 + $0x1a0] sm:$0xff] %vm1319, %v1307
        %1373 = vst.msk [vmem:[#allocation2 + $0x1a8] sm:$0xff] %vm1319, %v1308
        %1374 = vst.msk [vmem:[#allocation2 + $0x1b0] sm:$0xff] %vm1319, %v1309
        %1375 = vst.msk [vmem:[#allocation2 + $0x1b8] sm:$0xff] %vm1319, %v1310
        %1376 = vst.msk [vmem:[#allocation2 + $0x1c0] sm:$0xff] %vm1319, %v1311
        %1377 = vst.msk [vmem:[#allocation2 + $0x1c8] sm:$0xff] %vm1319, %v1312
        %1378 = vst.msk [vmem:[#allocation2 + $0x1d0] sm:$0xff] %vm1319, %v1313
        %1379 = vst.msk [vmem:[#allocation2 + $0x1d8] sm:$0xff] %vm1319, %v1314
        %1380 = vst.msk [vmem:[#allocation2 + $0x1e0] sm:$0xff] %vm1319, %v1315
        %1381 = vst.msk [vmem:[#allocation2 + $0x1e8] sm:$0xff] %vm1319, %v1316
        %1382 = vst.msk [vmem:[#allocation2 + $0x1f0] sm:$0xff] %vm1319, %v1317
        %1383 = vst.msk [vmem:[#allocation2 + $0x1f8] sm:$0xff] %vm1319, %v1318
        // Predicated region
        $region41: #{_conv_affine_mm_jit.1} parent=35 // pred_check
          %p1384 = pneg %p301
        $region42: #{_conv_affine_mm_jit.1} parent=35 // pred_check_branch
          %1386 = sbr.rel (%p1384) target = $region44
        $region43: #{_conv_affine_mm_jit.1} parent=35 // pred_region
          %v1387 = vld [vmem:[#allocation2] sm:$0xff]
          %v1388 = vld [vmem:[#allocation2 + $0x8] sm:$0xff]
          %v1389 = vld [vmem:[#allocation2 + $0x10] sm:$0xff]
          %v1390 = vld [vmem:[#allocation2 + $0x18] sm:$0xff]
          %v1391 = vld [vmem:[#allocation2 + $0x20] sm:$0xff]
          %v1392 = vld [vmem:[#allocation2 + $0x28] sm:$0xff]
          %v1393 = vld [vmem:[#allocation2 + $0x30] sm:$0xff]
          %v1394 = vld [vmem:[#allocation2 + $0x38] sm:$0xff]
          %v1395 = vld [vmem:[#allocation2 + $0x40] sm:$0xff]
          %v1396 = vld [vmem:[#allocation2 + $0x48] sm:$0xff]
          %v1397 = vld [vmem:[#allocation2 + $0x50] sm:$0xff]
          %v1398 = vld [vmem:[#allocation2 + $0x58] sm:$0xff]
          %v1399 = vld [vmem:[#allocation2 + $0x60] sm:$0xff]
          %v1400 = vld [vmem:[#allocation2 + $0x68] sm:$0xff]
          %v1401 = vld [vmem:[#allocation2 + $0x70] sm:$0xff]
          %v1402 = vld [vmem:[#allocation2 + $0x78] sm:$0xff]
          %v1403 = vld [vmem:[#allocation2 + $0x80] sm:$0xff]
          %v1404 = vld [vmem:[#allocation2 + $0x88] sm:$0xff]
          %v1405 = vld [vmem:[#allocation2 + $0x90] sm:$0xff]
          %v1406 = vld [vmem:[#allocation2 + $0x98] sm:$0xff]
          %v1407 = vld [vmem:[#allocation2 + $0xa0] sm:$0xff]
          %v1408 = vld [vmem:[#allocation2 + $0xa8] sm:$0xff]
          %v1409 = vld [vmem:[#allocation2 + $0xb0] sm:$0xff]
          %v1410 = vld [vmem:[#allocation2 + $0xb8] sm:$0xff]
          %v1411 = vld [vmem:[#allocation2 + $0xc0] sm:$0xff]
          %v1412 = vld [vmem:[#allocation2 + $0xc8] sm:$0xff]
          %v1413 = vld [vmem:[#allocation2 + $0xd0] sm:$0xff]
          %v1414 = vld [vmem:[#allocation2 + $0xd8] sm:$0xff]
          %v1415 = vld [vmem:[#allocation2 + $0xe0] sm:$0xff]
          %v1416 = vld [vmem:[#allocation2 + $0xe8] sm:$0xff]
          %v1417 = vld [vmem:[#allocation2 + $0xf0] sm:$0xff]
          %v1418 = vld [vmem:[#allocation2 + $0xf8] sm:$0xff]
          %v1419 = vld [vmem:[#allocation2 + $0x100] sm:$0xff]
          %v1420 = vld [vmem:[#allocation2 + $0x108] sm:$0xff]
          %v1421 = vld [vmem:[#allocation2 + $0x110] sm:$0xff]
          %v1422 = vld [vmem:[#allocation2 + $0x118] sm:$0xff]
          %v1423 = vld [vmem:[#allocation2 + $0x120] sm:$0xff]
          %v1424 = vld [vmem:[#allocation2 + $0x128] sm:$0xff]
          %v1425 = vld [vmem:[#allocation2 + $0x130] sm:$0xff]
          %v1426 = vld [vmem:[#allocation2 + $0x138] sm:$0xff]
          %v1427 = vld [vmem:[#allocation2 + $0x140] sm:$0xff]
          %v1428 = vld [vmem:[#allocation2 + $0x148] sm:$0xff]
          %v1429 = vld [vmem:[#allocation2 + $0x150] sm:$0xff]
          %v1430 = vld [vmem:[#allocation2 + $0x158] sm:$0xff]
          %v1431 = vld [vmem:[#allocation2 + $0x160] sm:$0xff]
          %v1432 = vld [vmem:[#allocation2 + $0x168] sm:$0xff]
          %v1433 = vld [vmem:[#allocation2 + $0x170] sm:$0xff]
          %v1434 = vld [vmem:[#allocation2 + $0x178] sm:$0xff]
          %v1435 = vld [vmem:[#allocation2 + $0x180] sm:$0xff]
          %v1436 = vld [vmem:[#allocation2 + $0x188] sm:$0xff]
          %v1437 = vld [vmem:[#allocation2 + $0x190] sm:$0xff]
          %v1438 = vld [vmem:[#allocation2 + $0x198] sm:$0xff]
          %v1439 = vld [vmem:[#allocation2 + $0x1a0] sm:$0xff]
          %v1440 = vld [vmem:[#allocation2 + $0x1a8] sm:$0xff]
          %v1441 = vld [vmem:[#allocation2 + $0x1b0] sm:$0xff]
          %v1442 = vld [vmem:[#allocation2 + $0x1b8] sm:$0xff]
          %v1443 = vld [vmem:[#allocation2 + $0x1c0] sm:$0xff]
          %v1444 = vld [vmem:[#allocation2 + $0x1c8] sm:$0xff]
          %v1445 = vld [vmem:[#allocation2 + $0x1d0] sm:$0xff]
          %v1446 = vld [vmem:[#allocation2 + $0x1d8] sm:$0xff]
          %v1447 = vld [vmem:[#allocation2 + $0x1e0] sm:$0xff]
          %v1448 = vld [vmem:[#allocation2 + $0x1e8] sm:$0xff]
          %v1449 = vld [vmem:[#allocation2 + $0x1f0] sm:$0xff]
          %v1450 = vld [vmem:[#allocation2 + $0x1f8] sm:$0xff]
          %v1451 = vld [vmem:[%s295] sm:$0x1]
          %v1453 = vlaneseq
          %v1454 = vshrl.u32 %v1453, 7
          %v1455 = vsub.s32 0, %v1454
          %v1456 = vrot.slane %v1451, %v1455
          %v1458 = vmul.f32 %v1387, %v1456
          %v1459 = vmul.f32 %v1388, %v1456
          %v1460 = vmul.f32 %v1389, %v1456
          %v1461 = vmul.f32 %v1390, %v1456
          %v1462 = vmul.f32 %v1391, %v1456
          %v1463 = vmul.f32 %v1392, %v1456
          %v1464 = vmul.f32 %v1393, %v1456
          %v1465 = vmul.f32 %v1394, %v1456
          %v1466 = vmul.f32 %v1395, %v1456
          %v1467 = vmul.f32 %v1396, %v1456
          %v1468 = vmul.f32 %v1397, %v1456
          %v1469 = vmul.f32 %v1398, %v1456
          %v1470 = vmul.f32 %v1399, %v1456
          %v1471 = vmul.f32 %v1400, %v1456
          %v1472 = vmul.f32 %v1401, %v1456
          %v1473 = vmul.f32 %v1402, %v1456
          %v1474 = vmul.f32 %v1403, %v1456
          %v1475 = vmul.f32 %v1404, %v1456
          %v1476 = vmul.f32 %v1405, %v1456
          %v1477 = vmul.f32 %v1406, %v1456
          %v1478 = vmul.f32 %v1407, %v1456
          %v1479 = vmul.f32 %v1408, %v1456
          %v1480 = vmul.f32 %v1409, %v1456
          %v1481 = vmul.f32 %v1410, %v1456
          %v1482 = vmul.f32 %v1411, %v1456
          %v1483 = vmul.f32 %v1412, %v1456
          %v1484 = vmul.f32 %v1413, %v1456
          %v1485 = vmul.f32 %v1414, %v1456
          %v1486 = vmul.f32 %v1415, %v1456
          %v1487 = vmul.f32 %v1416, %v1456
          %v1488 = vmul.f32 %v1417, %v1456
          %v1489 = vmul.f32 %v1418, %v1456
          %v1490 = vmul.f32 %v1419, %v1456
          %v1491 = vmul.f32 %v1420, %v1456
          %v1492 = vmul.f32 %v1421, %v1456
          %v1493 = vmul.f32 %v1422, %v1456
          %v1494 = vmul.f32 %v1423, %v1456
          %v1495 = vmul.f32 %v1424, %v1456
          %v1496 = vmul.f32 %v1425, %v1456
          %v1497 = vmul.f32 %v1426, %v1456
          %v1498 = vmul.f32 %v1427, %v1456
          %v1499 = vmul.f32 %v1428, %v1456
          %v1500 = vmul.f32 %v1429, %v1456
          %v1501 = vmul.f32 %v1430, %v1456
          %v1502 = vmul.f32 %v1431, %v1456
          %v1503 = vmul.f32 %v1432, %v1456
          %v1504 = vmul.f32 %v1433, %v1456
          %v1505 = vmul.f32 %v1434, %v1456
          %v1506 = vmul.f32 %v1435, %v1456
          %v1507 = vmul.f32 %v1436, %v1456
          %v1508 = vmul.f32 %v1437, %v1456
          %v1509 = vmul.f32 %v1438, %v1456
          %v1510 = vmul.f32 %v1439, %v1456
          %v1511 = vmul.f32 %v1440, %v1456
          %v1512 = vmul.f32 %v1441, %v1456
          %v1513 = vmul.f32 %v1442, %v1456
          %v1514 = vmul.f32 %v1443, %v1456
          %v1515 = vmul.f32 %v1444, %v1456
          %v1516 = vmul.f32 %v1445, %v1456
          %v1517 = vmul.f32 %v1446, %v1456
          %v1518 = vmul.f32 %v1447, %v1456
          %v1519 = vmul.f32 %v1448, %v1456
          %v1520 = vmul.f32 %v1449, %v1456
          %v1521 = vmul.f32 %v1450, %v1456
          %v1522 = vld [vmem:[%s298] sm:$0x1]
          %v1524 = vlaneseq
          %v1525 = vshrl.u32 %v1524, 7
          %v1526 = vsub.s32 0, %v1525
          %v1527 = vrot.slane %v1522, %v1526
          %v1529 = vadd.f32 %v1458, %v1527
          %v1530 = vadd.f32 %v1459, %v1527
          %v1531 = vadd.f32 %v1460, %v1527
          %v1532 = vadd.f32 %v1461, %v1527
          %v1533 = vadd.f32 %v1462, %v1527
          %v1534 = vadd.f32 %v1463, %v1527
          %v1535 = vadd.f32 %v1464, %v1527
          %v1536 = vadd.f32 %v1465, %v1527
          %v1537 = vadd.f32 %v1466, %v1527
          %v1538 = vadd.f32 %v1467, %v1527
          %v1539 = vadd.f32 %v1468, %v1527
          %v1540 = vadd.f32 %v1469, %v1527
          %v1541 = vadd.f32 %v1470, %v1527
          %v1542 = vadd.f32 %v1471, %v1527
          %v1543 = vadd.f32 %v1472, %v1527
          %v1544 = vadd.f32 %v1473, %v1527
          %v1545 = vadd.f32 %v1474, %v1527
          %v1546 = vadd.f32 %v1475, %v1527
          %v1547 = vadd.f32 %v1476, %v1527
          %v1548 = vadd.f32 %v1477, %v1527
          %v1549 = vadd.f32 %v1478, %v1527
          %v1550 = vadd.f32 %v1479, %v1527
          %v1551 = vadd.f32 %v1480, %v1527
          %v1552 = vadd.f32 %v1481, %v1527
          %v1553 = vadd.f32 %v1482, %v1527
          %v1554 = vadd.f32 %v1483, %v1527
          %v1555 = vadd.f32 %v1484, %v1527
          %v1556 = vadd.f32 %v1485, %v1527
          %v1557 = vadd.f32 %v1486, %v1527
          %v1558 = vadd.f32 %v1487, %v1527
          %v1559 = vadd.f32 %v1488, %v1527
          %v1560 = vadd.f32 %v1489, %v1527
          %v1561 = vadd.f32 %v1490, %v1527
          %v1562 = vadd.f32 %v1491, %v1527
          %v1563 = vadd.f32 %v1492, %v1527
          %v1564 = vadd.f32 %v1493, %v1527
          %v1565 = vadd.f32 %v1494, %v1527
          %v1566 = vadd.f32 %v1495, %v1527
          %v1567 = vadd.f32 %v1496, %v1527
          %v1568 = vadd.f32 %v1497, %v1527
          %v1569 = vadd.f32 %v1498, %v1527
          %v1570 = vadd.f32 %v1499, %v1527
          %v1571 = vadd.f32 %v1500, %v1527
          %v1572 = vadd.f32 %v1501, %v1527
          %v1573 = vadd.f32 %v1502, %v1527
          %v1574 = vadd.f32 %v1503, %v1527
          %v1575 = vadd.f32 %v1504, %v1527
          %v1576 = vadd.f32 %v1505, %v1527
          %v1577 = vadd.f32 %v1506, %v1527
          %v1578 = vadd.f32 %v1507, %v1527
          %v1579 = vadd.f32 %v1508, %v1527
          %v1580 = vadd.f32 %v1509, %v1527
          %v1581 = vadd.f32 %v1510, %v1527
          %v1582 = vadd.f32 %v1511, %v1527
          %v1583 = vadd.f32 %v1512, %v1527
          %v1584 = vadd.f32 %v1513, %v1527
          %v1585 = vadd.f32 %v1514, %v1527
          %v1586 = vadd.f32 %v1515, %v1527
          %v1587 = vadd.f32 %v1516, %v1527
          %v1588 = vadd.f32 %v1517, %v1527
          %v1589 = vadd.f32 %v1518, %v1527
          %v1590 = vadd.f32 %v1519, %v1527
          %v1591 = vadd.f32 %v1520, %v1527
          %v1592 = vadd.f32 %v1521, %v1527
          %v1593 = vmax.f32 %v1529, 0.0
          %v1594 = vmax.f32 %v1530, 0.0
          %v1595 = vmax.f32 %v1531, 0.0
          %v1596 = vmax.f32 %v1532, 0.0
          %v1597 = vmax.f32 %v1533, 0.0
          %v1598 = vmax.f32 %v1534, 0.0
          %v1599 = vmax.f32 %v1535, 0.0
          %v1600 = vmax.f32 %v1536, 0.0
          %v1601 = vmax.f32 %v1537, 0.0
          %v1602 = vmax.f32 %v1538, 0.0
          %v1603 = vmax.f32 %v1539, 0.0
          %v1604 = vmax.f32 %v1540, 0.0
          %v1605 = vmax.f32 %v1541, 0.0
          %v1606 = vmax.f32 %v1542, 0.0
          %v1607 = vmax.f32 %v1543, 0.0
          %v1608 = vmax.f32 %v1544, 0.0
          %v1609 = vmax.f32 %v1545, 0.0
          %v1610 = vmax.f32 %v1546, 0.0
          %v1611 = vmax.f32 %v1547, 0.0
          %v1612 = vmax.f32 %v1548, 0.0
          %v1613 = vmax.f32 %v1549, 0.0
          %v1614 = vmax.f32 %v1550, 0.0
          %v1615 = vmax.f32 %v1551, 0.0
          %v1616 = vmax.f32 %v1552, 0.0
          %v1617 = vmax.f32 %v1553, 0.0
          %v1618 = vmax.f32 %v1554, 0.0
          %v1619 = vmax.f32 %v1555, 0.0
          %v1620 = vmax.f32 %v1556, 0.0
          %v1621 = vmax.f32 %v1557, 0.0
          %v1622 = vmax.f32 %v1558, 0.0
          %v1623 = vmax.f32 %v1559, 0.0
          %v1624 = vmax.f32 %v1560, 0.0
          %v1625 = vmax.f32 %v1561, 0.0
          %v1626 = vmax.f32 %v1562, 0.0
          %v1627 = vmax.f32 %v1563, 0.0
          %v1628 = vmax.f32 %v1564, 0.0
          %v1629 = vmax.f32 %v1565, 0.0
          %v1630 = vmax.f32 %v1566, 0.0
          %v1631 = vmax.f32 %v1567, 0.0
          %v1632 = vmax.f32 %v1568, 0.0
          %v1633 = vmax.f32 %v1569, 0.0
          %v1634 = vmax.f32 %v1570, 0.0
          %v1635 = vmax.f32 %v1571, 0.0
          %v1636 = vmax.f32 %v1572, 0.0
          %v1637 = vmax.f32 %v1573, 0.0
          %v1638 = vmax.f32 %v1574, 0.0
          %v1639 = vmax.f32 %v1575, 0.0
          %v1640 = vmax.f32 %v1576, 0.0
          %v1641 = vmax.f32 %v1577, 0.0
          %v1642 = vmax.f32 %v1578, 0.0
          %v1643 = vmax.f32 %v1579, 0.0
          %v1644 = vmax.f32 %v1580, 0.0
          %v1645 = vmax.f32 %v1581, 0.0
          %v1646 = vmax.f32 %v1582, 0.0
          %v1647 = vmax.f32 %v1583, 0.0
          %v1648 = vmax.f32 %v1584, 0.0
          %v1649 = vmax.f32 %v1585, 0.0
          %v1650 = vmax.f32 %v1586, 0.0
          %v1651 = vmax.f32 %v1587, 0.0
          %v1652 = vmax.f32 %v1588, 0.0
          %v1653 = vmax.f32 %v1589, 0.0
          %v1654 = vmax.f32 %v1590, 0.0
          %v1655 = vmax.f32 %v1591, 0.0
          %v1656 = vmax.f32 %v1592, 0.0
          %v1657 = vpack.c.bf16 %v1594, %v1593
          %v1658 = vpack.c.bf16 %v1596, %v1595
          %v1659 = vpack.c.bf16 %v1598, %v1597
          %v1660 = vpack.c.bf16 %v1600, %v1599
          %v1661 = vpack.c.bf16 %v1602, %v1601
          %v1662 = vpack.c.bf16 %v1604, %v1603
          %v1663 = vpack.c.bf16 %v1606, %v1605
          %v1664 = vpack.c.bf16 %v1608, %v1607
          %v1665 = vpack.c.bf16 %v1610, %v1609
          %v1666 = vpack.c.bf16 %v1612, %v1611
          %v1667 = vpack.c.bf16 %v1614, %v1613
          %v1668 = vpack.c.bf16 %v1616, %v1615
          %v1669 = vpack.c.bf16 %v1618, %v1617
          %v1670 = vpack.c.bf16 %v1620, %v1619
          %v1671 = vpack.c.bf16 %v1622, %v1621
          %v1672 = vpack.c.bf16 %v1624, %v1623
          %v1673 = vpack.c.bf16 %v1626, %v1625
          %v1674 = vpack.c.bf16 %v1628, %v1627
          %v1675 = vpack.c.bf16 %v1630, %v1629
          %v1676 = vpack.c.bf16 %v1632, %v1631
          %v1677 = vpack.c.bf16 %v1634, %v1633
          %v1678 = vpack.c.bf16 %v1636, %v1635
          %v1679 = vpack.c.bf16 %v1638, %v1637
          %v1680 = vpack.c.bf16 %v1640, %v1639
          %v1681 = vpack.c.bf16 %v1642, %v1641
          %v1682 = vpack.c.bf16 %v1644, %v1643
          %v1683 = vpack.c.bf16 %v1646, %v1645
          %v1684 = vpack.c.bf16 %v1648, %v1647
          %v1685 = vpack.c.bf16 %v1650, %v1649
          %v1686 = vpack.c.bf16 %v1652, %v1651
          %v1687 = vpack.c.bf16 %v1654, %v1653
          %v1688 = vpack.c.bf16 %v1656, %v1655
          %v1721 = vunpack.c.l.b16 %v1657
          %v1722 = vunpack.c.h.b16 %v1657
          %v1723 = vunpack.c.l.b16 %v1658
          %v1724 = vunpack.c.h.b16 %v1658
          %v1725 = vunpack.c.l.b16 %v1659
          %v1726 = vunpack.c.h.b16 %v1659
          %v1727 = vunpack.c.l.b16 %v1660
          %v1728 = vunpack.c.h.b16 %v1660
          %v1729 = vunpack.c.l.b16 %v1661
          %v1730 = vunpack.c.h.b16 %v1661
          %v1731 = vunpack.c.l.b16 %v1662
          %v1732 = vunpack.c.h.b16 %v1662
          %v1733 = vunpack.c.l.b16 %v1663
          %v1734 = vunpack.c.h.b16 %v1663
          %v1735 = vunpack.c.l.b16 %v1664
          %v1736 = vunpack.c.h.b16 %v1664
          %v1737 = vunpack.c.l.b16 %v1665
          %v1738 = vunpack.c.h.b16 %v1665
          %v1739 = vunpack.c.l.b16 %v1666
          %v1740 = vunpack.c.h.b16 %v1666
          %v1741 = vunpack.c.l.b16 %v1667
          %v1742 = vunpack.c.h.b16 %v1667
          %v1743 = vunpack.c.l.b16 %v1668
          %v1744 = vunpack.c.h.b16 %v1668
          %v1745 = vunpack.c.l.b16 %v1669
          %v1746 = vunpack.c.h.b16 %v1669
          %v1747 = vunpack.c.l.b16 %v1670
          %v1748 = vunpack.c.h.b16 %v1670
          %v1749 = vunpack.c.l.b16 %v1671
          %v1750 = vunpack.c.h.b16 %v1671
          %v1751 = vunpack.c.l.b16 %v1672
          %v1752 = vunpack.c.h.b16 %v1672
          %v1753 = vunpack.c.l.b16 %v1673
          %v1754 = vunpack.c.h.b16 %v1673
          %v1755 = vunpack.c.l.b16 %v1674
          %v1756 = vunpack.c.h.b16 %v1674
          %v1757 = vunpack.c.l.b16 %v1675
          %v1758 = vunpack.c.h.b16 %v1675
          %v1759 = vunpack.c.l.b16 %v1676
          %v1760 = vunpack.c.h.b16 %v1676
          %v1761 = vunpack.c.l.b16 %v1677
          %v1762 = vunpack.c.h.b16 %v1677
          %v1763 = vunpack.c.l.b16 %v1678
          %v1764 = vunpack.c.h.b16 %v1678
          %v1765 = vunpack.c.l.b16 %v1679
          %v1766 = vunpack.c.h.b16 %v1679
          %v1767 = vunpack.c.l.b16 %v1680
          %v1768 = vunpack.c.h.b16 %v1680
          %v1769 = vunpack.c.l.b16 %v1681
          %v1770 = vunpack.c.h.b16 %v1681
          %v1771 = vunpack.c.l.b16 %v1682
          %v1772 = vunpack.c.h.b16 %v1682
          %v1773 = vunpack.c.l.b16 %v1683
          %v1774 = vunpack.c.h.b16 %v1683
          %v1775 = vunpack.c.l.b16 %v1684
          %v1776 = vunpack.c.h.b16 %v1684
          %v1777 = vunpack.c.l.b16 %v1685
          %v1778 = vunpack.c.h.b16 %v1685
          %v1779 = vunpack.c.l.b16 %v1686
          %v1780 = vunpack.c.h.b16 %v1686
          %v1781 = vunpack.c.l.b16 %v1687
          %v1782 = vunpack.c.h.b16 %v1687
          %v1783 = vunpack.c.l.b16 %v1688
          %v1784 = vunpack.c.h.b16 %v1688
          %v1785 = vpack.c.b16 %v1721, %v1721
          %v1786 = vpack.c.b16 %v1722, %v1722
          %v1787 = vpack.c.b16 %v1723, %v1723
          %v1788 = vpack.c.b16 %v1724, %v1724
          %v1789 = vpack.c.b16 %v1725, %v1725
          %v1790 = vpack.c.b16 %v1726, %v1726
          %v1791 = vpack.c.b16 %v1727, %v1727
          %v1792 = vpack.c.b16 %v1728, %v1728
          %v1793 = vpack.c.b16 %v1729, %v1729
          %v1794 = vpack.c.b16 %v1730, %v1730
          %v1795 = vpack.c.b16 %v1731, %v1731
          %v1796 = vpack.c.b16 %v1732, %v1732
          %v1797 = vpack.c.b16 %v1733, %v1733
          %v1798 = vpack.c.b16 %v1734, %v1734
          %v1799 = vpack.c.b16 %v1735, %v1735
          %v1800 = vpack.c.b16 %v1736, %v1736
          %v1801 = vpack.c.b16 %v1737, %v1737
          %v1802 = vpack.c.b16 %v1738, %v1738
          %v1803 = vpack.c.b16 %v1739, %v1739
          %v1804 = vpack.c.b16 %v1740, %v1740
          %v1805 = vpack.c.b16 %v1741, %v1741
          %v1806 = vpack.c.b16 %v1742, %v1742
          %v1807 = vpack.c.b16 %v1743, %v1743
          %v1808 = vpack.c.b16 %v1744, %v1744
          %v1809 = vpack.c.b16 %v1745, %v1745
          %v1810 = vpack.c.b16 %v1746, %v1746
          %v1811 = vpack.c.b16 %v1747, %v1747
          %v1812 = vpack.c.b16 %v1748, %v1748
          %v1813 = vpack.c.b16 %v1749, %v1749
          %v1814 = vpack.c.b16 %v1750, %v1750
          %v1815 = vpack.c.b16 %v1751, %v1751
          %v1816 = vpack.c.b16 %v1752, %v1752
          %v1817 = vpack.c.b16 %v1753, %v1753
          %v1818 = vpack.c.b16 %v1754, %v1754
          %v1819 = vpack.c.b16 %v1755, %v1755
          %v1820 = vpack.c.b16 %v1756, %v1756
          %v1821 = vpack.c.b16 %v1757, %v1757
          %v1822 = vpack.c.b16 %v1758, %v1758
          %v1823 = vpack.c.b16 %v1759, %v1759
          %v1824 = vpack.c.b16 %v1760, %v1760
          %v1825 = vpack.c.b16 %v1761, %v1761
          %v1826 = vpack.c.b16 %v1762, %v1762
          %v1827 = vpack.c.b16 %v1763, %v1763
          %v1828 = vpack.c.b16 %v1764, %v1764
          %v1829 = vpack.c.b16 %v1765, %v1765
          %v1830 = vpack.c.b16 %v1766, %v1766
          %v1831 = vpack.c.b16 %v1767, %v1767
          %v1832 = vpack.c.b16 %v1768, %v1768
          %v1833 = vpack.c.b16 %v1769, %v1769
          %v1834 = vpack.c.b16 %v1770, %v1770
          %v1835 = vpack.c.b16 %v1771, %v1771
          %v1836 = vpack.c.b16 %v1772, %v1772
          %v1837 = vpack.c.b16 %v1773, %v1773
          %v1838 = vpack.c.b16 %v1774, %v1774
          %v1839 = vpack.c.b16 %v1775, %v1775
          %v1840 = vpack.c.b16 %v1776, %v1776
          %v1841 = vpack.c.b16 %v1777, %v1777
          %v1842 = vpack.c.b16 %v1778, %v1778
          %v1843 = vpack.c.b16 %v1779, %v1779
          %v1844 = vpack.c.b16 %v1780, %v1780
          %v1845 = vpack.c.b16 %v1781, %v1781
          %v1846 = vpack.c.b16 %v1782, %v1782
          %v1847 = vpack.c.b16 %v1783, %v1783
          %v1848 = vpack.c.b16 %v1784, %v1784
          %vm1913 = vcmask 519168
          %1914 = vst.msk [vmem:[%s271] sm:$0xf] %vm1913, %v1785
          %1915 = vst.msk [vmem:[%s271 + $0x4] sm:$0xf] %vm1913, %v1786
          %1916 = vst.msk [vmem:[%s271 + $0x8] sm:$0xf] %vm1913, %v1787
          %1917 = vst.msk [vmem:[%s271 + $0xc] sm:$0xf] %vm1913, %v1788
          %1918 = vst.msk [vmem:[%s271 + $0x10] sm:$0xf] %vm1913, %v1789
          %1919 = vst.msk [vmem:[%s271 + $0x14] sm:$0xf] %vm1913, %v1790
          %1920 = vst.msk [vmem:[%s271 + $0x18] sm:$0xf] %vm1913, %v1791
          %1921 = vst.msk [vmem:[%s271 + $0x1c] sm:$0xf] %vm1913, %v1792
          %1922 = vst.msk [vmem:[%s271 + $0x20] sm:$0xf] %vm1913, %v1793
          %1923 = vst.msk [vmem:[%s271 + $0x24] sm:$0xf] %vm1913, %v1794
          %1924 = vst.msk [vmem:[%s271 + $0x28] sm:$0xf] %vm1913, %v1795
          %1925 = vst.msk [vmem:[%s271 + $0x2c] sm:$0xf] %vm1913, %v1796
          %1926 = vst.msk [vmem:[%s271 + $0x30] sm:$0xf] %vm1913, %v1797
          %1927 = vst.msk [vmem:[%s271 + $0x34] sm:$0xf] %vm1913, %v1798
          %1928 = vst.msk [vmem:[%s271 + $0x38] sm:$0xf] %vm1913, %v1799
          %1929 = vst.msk [vmem:[%s271 + $0x3c] sm:$0xf] %vm1913, %v1800
          %1930 = vst.msk [vmem:[%s271 + $0x40] sm:$0xf] %vm1913, %v1801
          %1931 = vst.msk [vmem:[%s271 + $0x44] sm:$0xf] %vm1913, %v1802
          %1932 = vst.msk [vmem:[%s271 + $0x48] sm:$0xf] %vm1913, %v1803
          %1933 = vst.msk [vmem:[%s271 + $0x4c] sm:$0xf] %vm1913, %v1804
          %1934 = vst.msk [vmem:[%s271 + $0x50] sm:$0xf] %vm1913, %v1805
          %1935 = vst.msk [vmem:[%s271 + $0x54] sm:$0xf] %vm1913, %v1806
          %1936 = vst.msk [vmem:[%s271 + $0x58] sm:$0xf] %vm1913, %v1807
          %1937 = vst.msk [vmem:[%s271 + $0x5c] sm:$0xf] %vm1913, %v1808
          %1938 = vst.msk [vmem:[%s271 + $0x60] sm:$0xf] %vm1913, %v1809
          %1939 = vst.msk [vmem:[%s271 + $0x64] sm:$0xf] %vm1913, %v1810
          %1940 = vst.msk [vmem:[%s271 + $0x68] sm:$0xf] %vm1913, %v1811
          %1941 = vst.msk [vmem:[%s271 + $0x6c] sm:$0xf] %vm1913, %v1812
          %1942 = vst.msk [vmem:[%s271 + $0x70] sm:$0xf] %vm1913, %v1813
          %1943 = vst.msk [vmem:[%s271 + $0x74] sm:$0xf] %vm1913, %v1814
          %1944 = vst.msk [vmem:[%s271 + $0x78] sm:$0xf] %vm1913, %v1815
          %1945 = vst.msk [vmem:[%s271 + $0x7c] sm:$0xf] %vm1913, %v1816
          %1946 = vst.msk [vmem:[%s271 + $0x80] sm:$0xf] %vm1913, %v1817
          %1947 = vst.msk [vmem:[%s271 + $0x84] sm:$0xf] %vm1913, %v1818
          %1948 = vst.msk [vmem:[%s271 + $0x88] sm:$0xf] %vm1913, %v1819
          %1949 = vst.msk [vmem:[%s271 + $0x8c] sm:$0xf] %vm1913, %v1820
          %1950 = vst.msk [vmem:[%s271 + $0x90] sm:$0xf] %vm1913, %v1821
          %1951 = vst.msk [vmem:[%s271 + $0x94] sm:$0xf] %vm1913, %v1822
          %1952 = vst.msk [vmem:[%s271 + $0x98] sm:$0xf] %vm1913, %v1823
          %1953 = vst.msk [vmem:[%s271 + $0x9c] sm:$0xf] %vm1913, %v1824
          %1954 = vst.msk [vmem:[%s271 + $0xa0] sm:$0xf] %vm1913, %v1825
          %1955 = vst.msk [vmem:[%s271 + $0xa4] sm:$0xf] %vm1913, %v1826
          %1956 = vst.msk [vmem:[%s271 + $0xa8] sm:$0xf] %vm1913, %v1827
          %1957 = vst.msk [vmem:[%s271 + $0xac] sm:$0xf] %vm1913, %v1828
          %1958 = vst.msk [vmem:[%s271 + $0xb0] sm:$0xf] %vm1913, %v1829
          %1959 = vst.msk [vmem:[%s271 + $0xb4] sm:$0xf] %vm1913, %v1830
          %1960 = vst.msk [vmem:[%s271 + $0xb8] sm:$0xf] %vm1913, %v1831
          %1961 = vst.msk [vmem:[%s271 + $0xbc] sm:$0xf] %vm1913, %v1832
          %1962 = vst.msk [vmem:[%s271 + $0xc0] sm:$0xf] %vm1913, %v1833
          %1963 = vst.msk [vmem:[%s271 + $0xc4] sm:$0xf] %vm1913, %v1834
          %1964 = vst.msk [vmem:[%s271 + $0xc8] sm:$0xf] %vm1913, %v1835
          %1965 = vst.msk [vmem:[%s271 + $0xcc] sm:$0xf] %vm1913, %v1836
          %1966 = vst.msk [vmem:[%s271 + $0xd0] sm:$0xf] %vm1913, %v1837
          %1967 = vst.msk [vmem:[%s271 + $0xd4] sm:$0xf] %vm1913, %v1838
          %1968 = vst.msk [vmem:[%s271 + $0xd8] sm:$0xf] %vm1913, %v1839
          %1969 = vst.msk [vmem:[%s271 + $0xdc] sm:$0xf] %vm1913, %v1840
          %1970 = vst.msk [vmem:[%s271 + $0xe0] sm:$0xf] %vm1913, %v1841
          %1971 = vst.msk [vmem:[%s271 + $0xe4] sm:$0xf] %vm1913, %v1842
          %1972 = vst.msk [vmem:[%s271 + $0xe8] sm:$0xf] %vm1913, %v1843
          %1973 = vst.msk [vmem:[%s271 + $0xec] sm:$0xf] %vm1913, %v1844
          %1974 = vst.msk [vmem:[%s271 + $0xf0] sm:$0xf] %vm1913, %v1845
          %1975 = vst.msk [vmem:[%s271 + $0xf4] sm:$0xf] %vm1913, %v1846
          %1976 = vst.msk [vmem:[%s271 + $0xf8] sm:$0xf] %vm1913, %v1847
          %1977 = vst.msk [vmem:[%s271 + $0xfc] sm:$0xf] %vm1913, %v1848
        $region44: #{_conv_affine_mm_jit.1} parent=35 // pred_fallthru
          _
        %s1978 = sand.u32 %s155, 1
        %s1979 = scalar_lea.sflag [#allocation4], %s1978
        %s1980 = sand.u32 %s155, 1
        %s1981 = smul.addr %s1980, 256
        %s1982 = scalar_lea.vmem [#allocation3], %s1981
        // Predicated region
        $region45: #{_conv_affine_mm_jit.1} parent=35 // pred_check
          %p1983 = pneg %p165
        $region46: #{_conv_affine_mm_jit.1} parent=35 // pred_check_branch
          %1985 = sbr.rel (%p1983) target = $region48
        $region47: #{_conv_affine_mm_jit.1} parent=35 // pred_region
          %s1986 = smul.u32 64, %s23
          %s1988 = ssub.s32 4096, 4096
          %1989 = vsyncadd %s1979, %s1988
          %s1990 = sadd.s32 %s24, %s1986
          %s1991 = smul.addr %s1990, 64
          %s1992 = scalar_lea.hbm %s4, %s1991
          %s1993 = sshll.u32 %s1982, 4
          %s1994 = int_to_ptr.vmem [resolvable:$true] %s1993
          %1999 = dma.vmem_to_hbm [thread:$0]  %s1994, 4096, %s1992, %s1979, 64, 64, 4
        $region48: #{_conv_affine_mm_jit.1} parent=35 // pred_fallthru
          _
      $region36: #{_conv_affine_mm_jit.1} parent=5 // pred_fallthru
        _
      %p2000 = scmp.le.s32.totalorder 2, %s13
      // Predicated region
      $region49: #{_conv_affine_mm_jit.1} parent=5 // pred_check
        %p2001 = pneg %p2000
      $region50: #{_conv_affine_mm_jit.1} parent=5 // pred_check_branch
        %2003 = sbr.rel (%p2001) target = $region52
      $region51: #{_conv_affine_mm_jit.1} parent=5 // pred_region
        %s2004 = ssub.s32 %s13, 2
        // Predicated region
        $region53: #{_conv_affine_mm_jit.1} parent=51 // pred_check
          %p2005 = pneg %p171
        $region54: #{_conv_affine_mm_jit.1} parent=51 // pred_check_branch
          %2007 = sbr.rel (%p2005) target = $region56
        $region55: #{_conv_affine_mm_jit.1} parent=51 // pred_region
          %s2008 = sand.u32 %s156, 1
          %s2009 = scalar_lea.sflag [#allocation4], %s2008
          %s2010 = sand.u32 %s156, 1
          %s2011 = smul.addr %s2010, 256
          %s2012 = scalar_lea.vmem [#allocation3], %s2011
          %2013 = dma.done %s2009, 4096
        $region56: #{_conv_affine_mm_jit.1} parent=51 // pred_fallthru
          _
      $region52: #{_conv_affine_mm_jit.1} parent=5 // pred_fallthru
        _
    $region6: #{_conv_affine_mm_jit.1} parent=1 // loop_footer
      %s17 = sadd.s32 1, %s13
    $region7: #{_conv_affine_mm_jit.1} parent=1 // loop_footer_branch
      %12 = sbr.rel target = $region3
    $region8: #{_conv_affine_mm_jit.1} parent=1 // loop_exit
      _
    %2014 = vsyncpa [#allocation4], 1
    %s2015 = scalar_lea.sflag [#allocation4], 1
    %2016 = vsyncpa %s2015, 1

</llo_original>
